<compile_context>
chip_gen: v7x
topology: tpu7x:2x2x1
jax: 0.10.0
libtpu: 0.0.40
codegen_flags: <defaults>
</compile_context>

<pallas_src>
import jax
import jax.numpy as jnp
import numpy as np
from jax.experimental import pallas as pl
from jax.experimental.pallas import tpu as pltpu

BN_EPS = 1e-5


def _classblock_kernel(x_ref, g1_ref, b1_ref, w1_ref, g2_ref, b2_ref, wc_ref,
                       feat_ref, logit_ref, hn_ref):
    """One grid step == one 128-wide class tile of the classifier matmul."""

    # ---- Bottleneck path: computed once (first class tile), cached in VMEM ----
    @pl.when(pl.program_id(0) == 0)
    def _():
        x = x_ref[...]                                    # (B, D_in) f32
        inv_b = 1.0 / x.shape[0]

        # BatchNorm1d(input_dim): training-mode batch stats, biased variance,
        # two-pass mean((x-mean)^2) exactly like PyTorch / the reference.
        mean1 = jnp.sum(x, axis=0, keepdims=True) * inv_b
        xc = x - mean1
        var1 = jnp.sum(xc * xc, axis=0, keepdims=True) * inv_b
        xn = xc * jax.lax.rsqrt(var1 + BN_EPS) * g1_ref[...] + b1_ref[...]

        xr = jnp.maximum(xn, 0.0)                         # ReLU

        # Linear(input_dim, num_bottleneck, bias=False): bf16 MXU, f32 accumulate.
        h = jnp.dot(xr.astype(jnp.bfloat16), w1_ref[...],
                    preferred_element_type=jnp.float32)   # (B, D_b) f32

        # BatchNorm1d(num_bottleneck): training-mode batch stats, two-pass.
        mean2 = jnp.sum(h, axis=0, keepdims=True) * inv_b
        hc = h - mean2
        var2 = jnp.sum(hc * hc, axis=0, keepdims=True) * inv_b
        hn = hc * jax.lax.rsqrt(var2 + BN_EPS) * g2_ref[...] + b2_ref[...]

        feat_ref[...] = hn.astype(feat_ref.dtype)         # resident; copied out once
        hn_ref[...] = hn.astype(jnp.bfloat16)             # cast once, reused per tile

    # ---- Classifier tile: Linear(num_bottleneck, class_num, bias=False) ----
    logit_ref[...] = jnp.dot(hn_ref[...], wc_ref[...],
                             preferred_element_type=jnp.float32
                             ).astype(logit_ref.dtype)


def class_block_forward(x, params, *, class_tile=128):
    """x: (B, input_dim) f32. params: dict of ClassBlock parameters (bf16 weights)."""
    B, d_in = x.shape
    w1 = params["w1"]                 # (d_in, d_b)      bf16
    wc = params["wc"]                 # (d_b, class_num) bf16
    d_b = w1.shape[1]
    n_cls = wc.shape[1]

    # Lane-dense classifier tiles: pad class_num to a multiple of class_tile
    # (itself a multiple of 128) so logits stores are unmasked and MXU tiles full.
    n_tiles = pl.cdiv(n_cls, class_tile)
    n_pad = n_tiles * class_tile
    if n_pad != n_cls:
        wc = jnp.pad(wc, ((0, 0), (0, n_pad - n_cls)))

    flops = 2 * B * d_in * d_b + 2 * B * d_b * n_pad
    bytes_accessed = (x.size * 4                      # x (f32)
                      + 2 * (d_in + d_b) * 4          # BN gammas/betas (f32)
                      + w1.size * 2 + wc.size * 2     # weights (bf16)
                      + B * d_b * 4 + B * n_pad * 4)  # feat + logits (f32)

    def resident(shape):
        # Full-array block whose index never changes -> stays in VMEM across grid.
        return pl.BlockSpec(shape, lambda j: (0,) * len(shape))

    feat, logits = pl.pallas_call(
        _classblock_kernel,
        grid=(n_tiles,),
        in_specs=[
            resident((B, d_in)),                              # x
            resident((1, d_in)),                              # gamma1
            resident((1, d_in)),                              # beta1
            resident((d_in, d_b)),                            # w1
            resident((1, d_b)),                               # gamma2
            resident((1, d_b)),                               # beta2
            pl.BlockSpec((d_b, class_tile), lambda j: (0, j)),   # wc tile (streamed)
        ],
        out_specs=(
            resident((B, d_b)),                                  # feat (resident)
            pl.BlockSpec((B, class_tile), lambda j: (0, j)),     # logits tile
        ),
        out_shape=(
            jax.ShapeDtypeStruct((B, d_b), jnp.float32),
            jax.ShapeDtypeStruct((B, n_pad), jnp.float32),
        ),
        scratch_shapes=[pltpu.VMEM((B, d_b), jnp.bfloat16)],     # cached bottleneck acts
        compiler_params=pltpu.CompilerParams(
            # Class tiles share the hoisted hn scratch, so the axis stays sequential.
            # TODO(synk): on v7x (2 TCs) shard class tiles across cores with a leading
            # "parallel" axis + per-core recompute of the bottleneck path.
            dimension_semantics=("arbitrary",),
        ),
        cost_estimate=pl.CostEstimate(flops=flops, transcendentals=0,
                                      bytes_accessed=bytes_accessed),
    )(x, params["g1"], params["b1"], w1, params["g2"], params["b2"], wc)

    return feat, logits[:, :n_cls]


def init_params(key, input_dim, class_num, num_bottleneck):
    """Deterministic init matching the PyTorch module's __init__ semantics."""
    k1, k2 = jax.random.split(key)
    # BatchNorm affine params (kaiming init: weight=1, bias=0).
    g1 = jnp.ones((1, input_dim), jnp.float32)
    b1 = jnp.zeros((1, input_dim), jnp.float32)
    g2 = jnp.ones((1, num_bottleneck), jnp.float32)
    b2 = jnp.zeros((1, num_bottleneck), jnp.float32)
    # Linear(input_dim, num_bottleneck): kaiming_normal fan_out -> std=sqrt(2/out).
    std1 = float(np.sqrt(2.0 / num_bottleneck))
    w1 = (jax.random.normal(k1, (num_bottleneck, input_dim), jnp.float32) * std1).T
    # classifier Linear(num_bottleneck, class_num): normal std=0.001.
    wc = (jax.random.normal(k2, (class_num, num_bottleneck), jnp.float32) * 0.001).T
    # Weights stored pre-transposed (in, out) and in bf16 (halves DMA bytes,
    # doubles MXU throughput); BN params stay f32.
    return dict(g1=g1, b1=b1, w1=w1.astype(jnp.bfloat16),
                g2=g2, b2=b2, wc=wc.astype(jnp.bfloat16))


def _reference_mixed(x, p):
    """Pure-JAX reference using the same op sequence / precision policy as the kernel."""
    inv_b = 1.0 / x.shape[0]
    m1 = jnp.sum(x, axis=0, keepdims=True) * inv_b
    xc = x - m1
    v1 = jnp.sum(xc * xc, axis=0, keepdims=True) * inv_b
    xn = xc * jax.lax.rsqrt(v1 + BN_EPS) * p["g1"] + p["b1"]
    xr = jnp.maximum(xn, 0.0)
    h = jnp.dot(xr.astype(jnp.bfloat16), p["w1"], preferred_element_type=jnp.float32)
    m2 = jnp.sum(h, axis=0, keepdims=True) * inv_b
    hc = h - m2
    v2 = jnp.sum(hc * hc, axis=0, keepdims=True) * inv_b
    hn = hc * jax.lax.rsqrt(v2 + BN_EPS) * p["g2"] + p["b2"]
    y = jnp.dot(hn.astype(jnp.bfloat16), p["wc"], preferred_element_type=jnp.float32)
    return hn, y


def _reference_f32(x, p):
    """Pure-f32 reference of the PyTorch forward (weights dequantized to f32)."""
    m1 = jnp.mean(x, axis=0, keepdims=True)
    v1 = jnp.mean((x - m1) ** 2, axis=0, keepdims=True)
    xn = (x - m1) / jnp.sqrt(v1 + BN_EPS) * p["g1"] + p["b1"]
    xr = jnp.maximum(xn, 0.0)
    h = xr @ p["w1"].astype(jnp.float32)
    m2 = jnp.mean(h, axis=0, keepdims=True)
    v2 = jnp.mean((h - m2) ** 2, axis=0, keepdims=True)
    hn = (h - m2) / jnp.sqrt(v2 + BN_EPS) * p["g2"] + p["b2"]
    return hn, hn @ p["wc"].astype(jnp.float32)


if __name__ == "__main__":
    # Lane-aligned feature dims, class_num deliberately NOT a multiple of 128 to
    # exercise the padding path; B=64 keeps the batch small while still giving
    # the MXU a reasonable M dimension.
    B, input_dim, num_bottleneck, class_num = 64, 256, 256, 300

    key = jax.random.PRNGKey(0)
    kx, kp = jax.random.split(key)
    x = jax.random.normal(kx, (B, input_dim), jnp.float32)
    params = init_params(kp, input_dim, class_num, num_bottleneck)

    feat, logits = jax.jit(class_block_forward)(x, params)
    feat = jax.block_until_ready(feat)
    logits = jax.block_until_ready(logits)

    assert feat.shape == (B, num_bottleneck)
    assert logits.shape == (B, class_num)

    # Tight check against a reference with the same mixed-precision op sequence.
    feat_m, logits_m = _reference_mixed(x, params)
    np.testing.assert_allclose(np.asarray(feat), np.asarray(feat_m),
                               rtol=1e-3, atol=2e-3)
    np.testing.assert_allclose(np.asarray(logits), np.asarray(logits_m),
                               rtol=1e-3, atol=2e-3)

    # Loose check against pure-f32 PyTorch-style math (bf16 matmul inputs are the
    # only deviation; BN statistics are exact f32).
    feat_f, logits_f = _reference_f32(x, params)
    np.testing.assert_allclose(np.asarray(feat), np.asarray(feat_f),
                               rtol=5e-2, atol=5e-2)
    np.testing.assert_allclose(np.asarray(logits), np.asarray(logits_f),
                               rtol=5e-2, atol=5e-2)

    print("KERNEL_OK")
</pallas_src>

<mosaic_0001>
module attributes {stable_mosaic.version = 11 : i64} {
  func.func @_classblock_kernel(%arg0: i32, %arg1: memref<64x256xf32, #tpu.memory_space<vmem>>, %arg2: memref<1x256xf32, #tpu.memory_space<vmem>>, %arg3: memref<1x256xf32, #tpu.memory_space<vmem>>, %arg4: memref<256x256xbf16, #tpu.memory_space<vmem>>, %arg5: memref<1x256xf32, #tpu.memory_space<vmem>>, %arg6: memref<1x256xf32, #tpu.memory_space<vmem>>, %arg7: memref<256x128xbf16, #tpu.memory_space<vmem>>, %arg8: memref<64x256xf32, #tpu.memory_space<vmem>>, %arg9: memref<64x128xf32, #tpu.memory_space<vmem>>, %arg10: memref<64x256xbf16, #tpu.memory_space<vmem>>) attributes {dimension_semantics = [#tpu.dimension_semantics<arbitrary>], iteration_bounds = array<i64: 3>, scalar_prefetch = 0 : i64, scratch_operands = 1 : i64, tpu.core_type = #tpu.core_type<tc>, window_params = [{pipeline_mode = #tpu.pipeline_mode<synchronous>, transform_indices = @transform_0, window_bounds = array<i64: 64, 256>}, {pipeline_mode = #tpu.pipeline_mode<synchronous>, transform_indices = @transform_1, window_bounds = array<i64: 1, 256>}, {pipeline_mode = #tpu.pipeline_mode<synchronous>, transform_indices = @transform_2, window_bounds = array<i64: 1, 256>}, {pipeline_mode = #tpu.pipeline_mode<synchronous>, transform_indices = @transform_3, window_bounds = array<i64: 256, 256>}, {pipeline_mode = #tpu.pipeline_mode<synchronous>, transform_indices = @transform_4, window_bounds = array<i64: 1, 256>}, {pipeline_mode = #tpu.pipeline_mode<synchronous>, transform_indices = @transform_5, window_bounds = array<i64: 1, 256>}, {transform_indices = @transform_6, window_bounds = array<i64: 256, 128>}, {pipeline_mode = #tpu.pipeline_mode<synchronous>, transform_indices = @transform_7, window_bounds = array<i64: 64, 256>}, {transform_indices = @transform_8, window_bounds = array<i64: 64, 128>}]} {
    %c0_i32 = arith.constant 0 : i32
    %0 = arith.cmpi eq, %arg0, %c0_i32 : i32
    %1 = arith.extui %0 : i1 to i32
    %c0_i32_0 = arith.constant 0 : i32
    %2 = arith.cmpi ne, %1, %c0_i32_0 : i32
    scf.if %2 {
      %c0_6 = arith.constant 0 : index
      %c0_7 = arith.constant 0 : index
      %7 = vector.load %arg1[%c0_6, %c0_7] : memref<64x256xf32, #tpu.memory_space<vmem>>, vector<64x256xf32>
      %cst_8 = arith.constant dense<0.000000e+00> : vector<256xf32>
      %8 = vector.multi_reduction <add>, %7, %cst_8 [0] : vector<64x256xf32> to vector<256xf32>
      %9 = vector.shape_cast %8 : vector<256xf32> to vector<1x256xf32>
      %cst_9 = arith.constant 1.562500e-02 : f32
      %10 = vector.broadcast %cst_9 : f32 to vector<1x256xf32>
      %11 = arith.mulf %9, %10 : vector<1x256xf32>
      %12 = vector.broadcast %11 : vector<1x256xf32> to vector<64x256xf32>
      %13 = arith.subf %7, %12 : vector<64x256xf32>
      %14 = arith.mulf %13, %13 : vector<64x256xf32>
      %cst_10 = arith.constant dense<0.000000e+00> : vector<256xf32>
      %15 = vector.multi_reduction <add>, %14, %cst_10 [0] : vector<64x256xf32> to vector<256xf32>
      %16 = vector.shape_cast %15 : vector<256xf32> to vector<1x256xf32>
      %cst_11 = arith.constant 1.562500e-02 : f32
      %17 = vector.broadcast %cst_11 : f32 to vector<1x256xf32>
      %18 = arith.mulf %16, %17 : vector<1x256xf32>
      %cst_12 = arith.constant 9.99999974E-6 : f32
      %19 = vector.broadcast %cst_12 : f32 to vector<1x256xf32>
      %20 = arith.addf %18, %19 : vector<1x256xf32>
      %21 = math.rsqrt %20 : vector<1x256xf32>
      %22 = vector.broadcast %21 : vector<1x256xf32> to vector<64x256xf32>
      %23 = arith.mulf %13, %22 : vector<64x256xf32>
      %c0_13 = arith.constant 0 : index
      %c0_14 = arith.constant 0 : index
      %24 = vector.load %arg2[%c0_13, %c0_14] : memref<1x256xf32, #tpu.memory_space<vmem>>, vector<1x256xf32>
      %25 = vector.broadcast %24 : vector<1x256xf32> to vector<64x256xf32>
      %26 = arith.mulf %23, %25 : vector<64x256xf32>
      %c0_15 = arith.constant 0 : index
      %c0_16 = arith.constant 0 : index
      %27 = vector.load %arg3[%c0_15, %c0_16] : memref<1x256xf32, #tpu.memory_space<vmem>>, vector<1x256xf32>
      %28 = vector.broadcast %27 : vector<1x256xf32> to vector<64x256xf32>
      %29 = arith.addf %26, %28 : vector<64x256xf32>
      %cst_17 = arith.constant 0.000000e+00 : f32
      %30 = vector.broadcast %cst_17 : f32 to vector<64x256xf32>
      %31 = arith.maximumf %29, %30 : vector<64x256xf32>
      %32 = arith.truncf %31 : vector<64x256xf32> to vector<64x256xbf16>
      %c0_18 = arith.constant 0 : index
      %c0_19 = arith.constant 0 : index
      %33 = vector.load %arg4[%c0_18, %c0_19] : memref<256x256xbf16, #tpu.memory_space<vmem>>, vector<256x256xbf16>
      %cst_20 = arith.constant dense<0.000000e+00> : vector<64x256xf32>
      %34 = tpu.matmul %32, %33, %cst_20 {dimension_numbers = #tpu.dot_dimension_numbers<[1], [0], [0], [1], [0, 0, 1, 1], [], []>} : vector<64x256xbf16>, vector<256x256xbf16>, vector<64x256xf32> -> vector<64x256xf32>
      %cst_21 = arith.constant dense<0.000000e+00> : vector<256xf32>
      %35 = vector.multi_reduction <add>, %34, %cst_21 [0] : vector<64x256xf32> to vector<256xf32>
      %36 = vector.shape_cast %35 : vector<256xf32> to vector<1x256xf32>
      %cst_22 = arith.constant 1.562500e-02 : f32
      %37 = vector.broadcast %cst_22 : f32 to vector<1x256xf32>
      %38 = arith.mulf %36, %37 : vector<1x256xf32>
      %39 = vector.broadcast %38 : vector<1x256xf32> to vector<64x256xf32>
      %40 = arith.subf %34, %39 : vector<64x256xf32>
      %41 = arith.mulf %40, %40 : vector<64x256xf32>
      %cst_23 = arith.constant dense<0.000000e+00> : vector<256xf32>
      %42 = vector.multi_reduction <add>, %41, %cst_23 [0] : vector<64x256xf32> to vector<256xf32>
      %43 = vector.shape_cast %42 : vector<256xf32> to vector<1x256xf32>
      %cst_24 = arith.constant 1.562500e-02 : f32
      %44 = vector.broadcast %cst_24 : f32 to vector<1x256xf32>
      %45 = arith.mulf %43, %44 : vector<1x256xf32>
      %cst_25 = arith.constant 9.99999974E-6 : f32
      %46 = vector.broadcast %cst_25 : f32 to vector<1x256xf32>
      %47 = arith.addf %45, %46 : vector<1x256xf32>
      %48 = math.rsqrt %47 : vector<1x256xf32>
      %49 = vector.broadcast %48 : vector<1x256xf32> to vector<64x256xf32>
      %50 = arith.mulf %40, %49 : vector<64x256xf32>
      %c0_26 = arith.constant 0 : index
      %c0_27 = arith.constant 0 : index
      %51 = vector.load %arg5[%c0_26, %c0_27] : memref<1x256xf32, #tpu.memory_space<vmem>>, vector<1x256xf32>
      %52 = vector.broadcast %51 : vector<1x256xf32> to vector<64x256xf32>
      %53 = arith.mulf %50, %52 : vector<64x256xf32>
      %c0_28 = arith.constant 0 : index
      %c0_29 = arith.constant 0 : index
      %54 = vector.load %arg6[%c0_28, %c0_29] : memref<1x256xf32, #tpu.memory_space<vmem>>, vector<1x256xf32>
      %55 = vector.broadcast %54 : vector<1x256xf32> to vector<64x256xf32>
      %56 = arith.addf %53, %55 : vector<64x256xf32>
      %c0_30 = arith.constant 0 : index
      %c0_31 = arith.constant 0 : index
      %57 = vector.load %arg8[%c0_30, %c0_31] : memref<64x256xf32, #tpu.memory_space<vmem>>, vector<64x256xf32>
      tpu.vector_store %arg8[%c0_30, %c0_31], %56 {strides = array<i32>} : memref<64x256xf32, #tpu.memory_space<vmem>>, vector<64x256xf32>,
      %58 = arith.truncf %56 : vector<64x256xf32> to vector<64x256xbf16>
      %c0_32 = arith.constant 0 : index
      %c0_33 = arith.constant 0 : index
      %59 = vector.load %arg10[%c0_32, %c0_33] : memref<64x256xbf16, #tpu.memory_space<vmem>>, vector<64x256xbf16>
      tpu.vector_store %arg10[%c0_32, %c0_33], %58 {strides = array<i32>} : memref<64x256xbf16, #tpu.memory_space<vmem>>, vector<64x256xbf16>,
    } else {
    }
    %c0 = arith.constant 0 : index
    %c0_1 = arith.constant 0 : index
    %3 = vector.load %arg10[%c0, %c0_1] : memref<64x256xbf16, #tpu.memory_space<vmem>>, vector<64x256xbf16>
    %c0_2 = arith.constant 0 : index
    %c0_3 = arith.constant 0 : index
    %4 = vector.load %arg7[%c0_2, %c0_3] : memref<256x128xbf16, #tpu.memory_space<vmem>>, vector<256x128xbf16>
    %cst = arith.constant dense<0.000000e+00> : vector<64x128xf32>
    %5 = tpu.matmul %3, %4, %cst {dimension_numbers = #tpu.dot_dimension_numbers<[1], [0], [0], [1], [0, 0, 1, 1], [], []>} : vector<64x256xbf16>, vector<256x128xbf16>, vector<64x128xf32> -> vector<64x128xf32>
    %c0_4 = arith.constant 0 : index
    %c0_5 = arith.constant 0 : index
    %6 = vector.load %arg9[%c0_4, %c0_5] : memref<64x128xf32, #tpu.memory_space<vmem>>, vector<64x128xf32>
    tpu.vector_store %arg9[%c0_4, %c0_5], %5 {strides = array<i32>} : memref<64x128xf32, #tpu.memory_space<vmem>>, vector<64x128xf32>,
    return
  }
  func.func @transform_0(%arg0: i32) -> (i32, i32) {
    %c0_i32 = arith.constant 0 : i32
    %c0_i32_0 = arith.constant 0 : i32
    %c0_i32_1 = arith.constant 0 : i32
    return %c0_i32, %c0_i32_0 : i32, i32
  }
  func.func @transform_1(%arg0: i32) -> (i32, i32) {
    %c0_i32 = arith.constant 0 : i32
    %c0_i32_0 = arith.constant 0 : i32
    %c0_i32_1 = arith.constant 0 : i32
    return %c0_i32, %c0_i32_0 : i32, i32
  }
  func.func @transform_2(%arg0: i32) -> (i32, i32) {
    %c0_i32 = arith.constant 0 : i32
    %c0_i32_0 = arith.constant 0 : i32
    %c0_i32_1 = arith.constant 0 : i32
    return %c0_i32, %c0_i32_0 : i32, i32
  }
  func.func @transform_3(%arg0: i32) -> (i32, i32) {
    %c0_i32 = arith.constant 0 : i32
    %c0_i32_0 = arith.constant 0 : i32
    %c0_i32_1 = arith.constant 0 : i32
    return %c0_i32, %c0_i32_0 : i32, i32
  }
  func.func @transform_4(%arg0: i32) -> (i32, i32) {
    %c0_i32 = arith.constant 0 : i32
    %c0_i32_0 = arith.constant 0 : i32
    %c0_i32_1 = arith.constant 0 : i32
    return %c0_i32, %c0_i32_0 : i32, i32
  }
  func.func @transform_5(%arg0: i32) -> (i32, i32) {
    %c0_i32 = arith.constant 0 : i32
    %c0_i32_0 = arith.constant 0 : i32
    %c0_i32_1 = arith.constant 0 : i32
    return %c0_i32, %c0_i32_0 : i32, i32
  }
  func.func @transform_6(%arg0: i32) -> (i32, i32) {
    %c0_i32 = arith.constant 0 : i32
    %c0_i32_0 = arith.constant 0 : i32
    return %c0_i32, %arg0 : i32, i32
  }
  func.func @transform_7(%arg0: i32) -> (i32, i32) {
    %c0_i32 = arith.constant 0 : i32
    %c0_i32_0 = arith.constant 0 : i32
    %c0_i32_1 = arith.constant 0 : i32
    return %c0_i32, %c0_i32_0 : i32, i32
  }
  func.func @transform_8(%arg0: i32) -> (i32, i32) {
    %c0_i32 = arith.constant 0 : i32
    %c0_i32_0 = arith.constant 0 : i32
    return %c0_i32, %arg0 : i32, i32
  }
}

</mosaic_0001>

<llo_original>
// kernel: class_block_forward.1
$region0: #{class_block_forward.1}
  #allocation0 [shape = 'u32[]', space=smem, size = 0x4, offset = 0x4, fixed_abs, tag = 'smem constant byte address 0x4 - core index']
  #allocation1 [shape = 'u32[144,128]{1,0:T(1,128)}', space=vmem, size = 0x12000, scoped, tag = 'internal scratch']
  #allocation2 [shape = 'bf16[64,256]{1,0:T(16,128)(2,1)}', space=vmem, size = 0x8000, scoped, tag = 'scratch operand']
  %s0 = inlined_call_operand.vmem [shape: f32[64,256], index: 0, kind: input, shape index: {}]
  %s1 = inlined_call_operand.vmem [shape: f32[1,256], index: 1, kind: input, shape index: {}]
  %s2 = inlined_call_operand.vmem [shape: f32[1,256], index: 2, kind: input, shape index: {}]
  %s3 = inlined_call_operand.vmem [shape: bf16[256,256], index: 3, kind: input, shape index: {}]
  %s4 = inlined_call_operand.vmem [shape: f32[1,256], index: 4, kind: input, shape index: {}]
  %s5 = inlined_call_operand.vmem [shape: f32[1,256], index: 5, kind: input, shape index: {}]
  %s6 = inlined_call_operand.vmem [shape: bf16[256,384], index: 6, kind: input, shape index: {}]
  %s7 = inlined_call_operand.hbm [shape: f32[64,256], index: 7, kind: output, shape index: {0}]
  %s8 = inlined_call_operand.hbm [shape: f32[64,384], index: 8, kind: output, shape index: {1}]
  %9 = xla_tuple %s7, %s8
  %s10 = sld [smem:[#allocation0]]
  $region114: #{class_block_forward.1} parent=0
    _
  %s12 = ssub.s32 1, %s10
  %s13 = scalar_select 0, %s12, %s10
  $region1: #{class_block_forward.1} parent=0
    #allocation3 [shape = 'u8[131072]{0}', space=vmem, size = 0x20000, scoped, tag = 'input window, operand 6']
    #allocation4 [shape = 'u8[65536]{0}', space=vmem, size = 0x10000, scoped, tag = 'output window, operand 0, single buffered']
    #allocation5 [shape = 's32[2]{0}', space=sflag, size = 0x8, scoped, tag = 'scoped memory for class_block_forward.1']
    #allocation6 [shape = 'u8[65536]{0}', space=vmem, size = 0x10000, scoped, tag = 'output window, operand 1']
    #allocation7 [shape = 's32[2]{0}', space=sflag, size = 0x8, scoped, tag = 'scoped memory for class_block_forward.1']
    %14 = vsyncpa [#allocation5], 0
    %15 = vsyncpa [#allocation7], 0
    %s16 = scalar_lea.sflag [#allocation7], 1
    %17 = vsyncpa %s16, 0
    loop: start=0, step=1, limit=5
    $region2: #{class_block_forward.1} parent=1 // loop_pre_header
      _
    $region3: #{class_block_forward.1} parent=1 // loop_header
      %s19 = sphi 0, %s23
      %p20 = scmp.ge.s32.totalorder %s19, 5
      %s27 = sphi 0, %s27
      %s29 = sphi 0, %s27
      %s30 = sphi 0, %s29
      %s44 = sphi 0, %s30
      %s48 = sphi 0, %s48
      %s50 = sphi 0, %s48
      %s51 = sphi 0, %s50
      %s65 = sphi 0, %s51
      %s69 = sphi 0, %s69
      %s71 = sphi 0, %s69
      %s72 = sphi 0, %s71
      %s86 = sphi 0, %s72
      %s90 = sphi 0, %s90
      %s92 = sphi 0, %s90
      %s93 = sphi 0, %s92
      %s107 = sphi 0, %s93
      %s111 = sphi 0, %s111
      %s113 = sphi 0, %s111
      %s114 = sphi 0, %s113
      %s128 = sphi 0, %s114
      %s132 = sphi 0, %s132
      %s134 = sphi 0, %s132
      %s135 = sphi 0, %s134
      %s149 = sphi 0, %s135
      %s155 = sphi 0, %s157
      %s158 = sphi 0, %s155
      %s159 = sphi 0, %s158
      %s175 = sphi 0, %s159
      %s179 = sphi 0, %s179
      %s181 = sphi 0, %s179
      %s182 = sphi 0, %s181
      %s196 = sphi 0, %s182
      %s202 = sphi 0, %s204
      %s205 = sphi 0, %s202
      %s206 = sphi 0, %s205
      %s222 = sphi 0, %s206
    $region4: #{class_block_forward.1} parent=1 // loop_header_branch
      %22 = sbr.rel (%p20) target = $region8
    $region5: #{class_block_forward.1} parent=1 // loop_body
      %s24 = ssub.s32 %s19, 1
      %s25 = ssub.s32 %s19, 2
      %s26 = sadd.s32 %s19, 1
      %s28 = sadd.s32 %s27, 1
      %p31 = scmp.eq.s32.totalorder %s19, 2
      %p32 = scmp.ne.s32.totalorder %s27, %s29
      %p33 = scmp.eq.s32.totalorder %s19, 0
      %p34 = por %p32, %p33
      %p35 = scmp.ne.s32.totalorder %s27, %s29
      %p36 = scmp.eq.s32.totalorder %s24, 2
      %p37 = por %p35, %p36
      %p38 = scmp.ne.s32.totalorder %s29, %s30
      %p39 = scmp.eq.s32.totalorder %s24, 0
      %p40 = por %p38, %p39
      %p41 = scmp.ne.s32.totalorder %s29, %s30
      %p42 = scmp.eq.s32.totalorder %s25, 2
      %p43 = por %p41, %p42
      %p45 = scmp.ne.s32.totalorder %s30, %s44
      %p46 = scmp.eq.s32.totalorder %s25, 0
      %p47 = por %p45, %p46
      %s49 = sadd.s32 %s48, 1
      %p52 = scmp.eq.s32.totalorder %s19, 2
      %p53 = scmp.ne.s32.totalorder %s48, %s50
      %p54 = scmp.eq.s32.totalorder %s19, 0
      %p55 = por %p53, %p54
      %p56 = scmp.ne.s32.totalorder %s48, %s50
      %p57 = scmp.eq.s32.totalorder %s24, 2
      %p58 = por %p56, %p57
      %p59 = scmp.ne.s32.totalorder %s50, %s51
      %p60 = scmp.eq.s32.totalorder %s24, 0
      %p61 = por %p59, %p60
      %p62 = scmp.ne.s32.totalorder %s50, %s51
      %p63 = scmp.eq.s32.totalorder %s25, 2
      %p64 = por %p62, %p63
      %p66 = scmp.ne.s32.totalorder %s51, %s65
      %p67 = scmp.eq.s32.totalorder %s25, 0
      %p68 = por %p66, %p67
      %s70 = sadd.s32 %s69, 1
      %p73 = scmp.eq.s32.totalorder %s19, 2
      %p74 = scmp.ne.s32.totalorder %s69, %s71
      %p75 = scmp.eq.s32.totalorder %s19, 0
      %p76 = por %p74, %p75
      %p77 = scmp.ne.s32.totalorder %s69, %s71
      %p78 = scmp.eq.s32.totalorder %s24, 2
      %p79 = por %p77, %p78
      %p80 = scmp.ne.s32.totalorder %s71, %s72
      %p81 = scmp.eq.s32.totalorder %s24, 0
      %p82 = por %p80, %p81
      %p83 = scmp.ne.s32.totalorder %s71, %s72
      %p84 = scmp.eq.s32.totalorder %s25, 2
      %p85 = por %p83, %p84
      %p87 = scmp.ne.s32.totalorder %s72, %s86
      %p88 = scmp.eq.s32.totalorder %s25, 0
      %p89 = por %p87, %p88
      %s91 = sadd.s32 %s90, 1
      %p94 = scmp.eq.s32.totalorder %s19, 2
      %p95 = scmp.ne.s32.totalorder %s90, %s92
      %p96 = scmp.eq.s32.totalorder %s19, 0
      %p97 = por %p95, %p96
      %p98 = scmp.ne.s32.totalorder %s90, %s92
      %p99 = scmp.eq.s32.totalorder %s24, 2
      %p100 = por %p98, %p99
      %p101 = scmp.ne.s32.totalorder %s92, %s93
      %p102 = scmp.eq.s32.totalorder %s24, 0
      %p103 = por %p101, %p102
      %p104 = scmp.ne.s32.totalorder %s92, %s93
      %p105 = scmp.eq.s32.totalorder %s25, 2
      %p106 = por %p104, %p105
      %p108 = scmp.ne.s32.totalorder %s93, %s107
      %p109 = scmp.eq.s32.totalorder %s25, 0
      %p110 = por %p108, %p109
      %s112 = sadd.s32 %s111, 1
      %p115 = scmp.eq.s32.totalorder %s19, 2
      %p116 = scmp.ne.s32.totalorder %s111, %s113
      %p117 = scmp.eq.s32.totalorder %s19, 0
      %p118 = por %p116, %p117
      %p119 = scmp.ne.s32.totalorder %s111, %s113
      %p120 = scmp.eq.s32.totalorder %s24, 2
      %p121 = por %p119, %p120
      %p122 = scmp.ne.s32.totalorder %s113, %s114
      %p123 = scmp.eq.s32.totalorder %s24, 0
      %p124 = por %p122, %p123
      %p125 = scmp.ne.s32.totalorder %s113, %s114
      %p126 = scmp.eq.s32.totalorder %s25, 2
      %p127 = por %p125, %p126
      %p129 = scmp.ne.s32.totalorder %s114, %s128
      %p130 = scmp.eq.s32.totalorder %s25, 0
      %p131 = por %p129, %p130
      %s133 = sadd.s32 %s132, 1
      %p136 = scmp.eq.s32.totalorder %s19, 2
      %p137 = scmp.ne.s32.totalorder %s132, %s134
      %p138 = scmp.eq.s32.totalorder %s19, 0
      %p139 = por %p137, %p138
      %p140 = scmp.ne.s32.totalorder %s132, %s134
      %p141 = scmp.eq.s32.totalorder %s24, 2
      %p142 = por %p140, %p141
      %p143 = scmp.ne.s32.totalorder %s134, %s135
      %p144 = scmp.eq.s32.totalorder %s24, 0
      %p145 = por %p143, %p144
      %p146 = scmp.ne.s32.totalorder %s134, %s135
      %p147 = scmp.eq.s32.totalorder %s25, 2
      %p148 = por %p146, %p147
      %p150 = scmp.ne.s32.totalorder %s135, %s149
      %p151 = scmp.eq.s32.totalorder %s25, 0
      %p152 = por %p150, %p151
      %s153 = ssub.s32 %s19, %s26
      %p154 = scmp.eq.s32.totalorder %s153, 0
      %s156 = sadd.s32 %s155, 1
      %s157 = scalar_select %p154, %s155, %s156
      %p160 = pneg %p154
      %p161 = scmp.eq.s32.totalorder %s19, 2
      %p162 = por %p160, %p161
      %p163 = scmp.ne.s32.totalorder %s155, %s158
      %p164 = scmp.eq.s32.totalorder %s19, 0
      %p165 = por %p163, %p164
      %p166 = scmp.ne.s32.totalorder %s155, %s158
      %p167 = scmp.eq.s32.totalorder %s24, 2
      %p168 = por %p166, %p167
      %p169 = scmp.ne.s32.totalorder %s158, %s159
      %p170 = scmp.eq.s32.totalorder %s24, 0
      %p171 = por %p169, %p170
      %p172 = scmp.ne.s32.totalorder %s158, %s159
      %p173 = scmp.eq.s32.totalorder %s25, 2
      %p174 = por %p172, %p173
      %p176 = scmp.ne.s32.totalorder %s159, %s175
      %p177 = scmp.eq.s32.totalorder %s25, 0
      %p178 = por %p176, %p177
      %s180 = sadd.s32 %s179, 1
      %p183 = scmp.eq.s32.totalorder %s19, 2
      %p184 = scmp.ne.s32.totalorder %s179, %s181
      %p185 = scmp.eq.s32.totalorder %s19, 0
      %p186 = por %p184, %p185
      %p187 = scmp.ne.s32.totalorder %s179, %s181
      %p188 = scmp.eq.s32.totalorder %s24, 2
      %p189 = por %p187, %p188
      %p190 = scmp.ne.s32.totalorder %s181, %s182
      %p191 = scmp.eq.s32.totalorder %s24, 0
      %p192 = por %p190, %p191
      %p193 = scmp.ne.s32.totalorder %s181, %s182
      %p194 = scmp.eq.s32.totalorder %s25, 2
      %p195 = por %p193, %p194
      %p197 = scmp.ne.s32.totalorder %s182, %s196
      %p198 = scmp.eq.s32.totalorder %s25, 0
      %p199 = por %p197, %p198
      %s200 = ssub.s32 %s19, %s26
      %p201 = scmp.eq.s32.totalorder %s200, 0
      %s203 = sadd.s32 %s202, 1
      %s204 = scalar_select %p201, %s202, %s203
      %p207 = pneg %p201
      %p208 = scmp.eq.s32.totalorder %s19, 2
      %p209 = por %p207, %p208
      %p210 = scmp.ne.s32.totalorder %s202, %s205
      %p211 = scmp.eq.s32.totalorder %s19, 0
      %p212 = por %p210, %p211
      %p213 = scmp.ne.s32.totalorder %s202, %s205
      %p214 = scmp.eq.s32.totalorder %s24, 2
      %p215 = por %p213, %p214
      %p216 = scmp.ne.s32.totalorder %s205, %s206
      %p217 = scmp.eq.s32.totalorder %s24, 0
      %p218 = por %p216, %p217
      %p219 = scmp.ne.s32.totalorder %s205, %s206
      %p220 = scmp.eq.s32.totalorder %s25, 2
      %p221 = por %p219, %p220
      %p223 = scmp.ne.s32.totalorder %s206, %s222
      %p224 = scmp.eq.s32.totalorder %s25, 0
      %p225 = por %p223, %p224
      %p226 = scmp.le.s32.totalorder 1, %s19
      %p227 = scmp.lt.s32.totalorder %s19, 4
      %p228 = pnand %p226, %p227
      %p229 = pneg %p228
      // Predicated region
      $region9: #{class_block_forward.1} parent=5 // pred_check
        _
      $region10: #{class_block_forward.1} parent=5 // pred_check_branch
        %231 = sbr.rel (%p228) target = $region12
      $region11: #{class_block_forward.1} parent=5 // pred_region
        %s232 = ssub.s32 %s19, 1
        // Predicated region
        $region13: #{class_block_forward.1} parent=11 // pred_check
          %p233 = pneg %p40
        $region14: #{class_block_forward.1} parent=11 // pred_check_branch
          %235 = sbr.rel (%p233) target = $region16
        $region15: #{class_block_forward.1} parent=11 // pred_region
          _
        $region16: #{class_block_forward.1} parent=11 // pred_fallthru
          _
        // Predicated region
        $region17: #{class_block_forward.1} parent=11 // pred_check
          %p236 = pneg %p61
        $region18: #{class_block_forward.1} parent=11 // pred_check_branch
          %238 = sbr.rel (%p236) target = $region20
        $region19: #{class_block_forward.1} parent=11 // pred_region
          _
        $region20: #{class_block_forward.1} parent=11 // pred_fallthru
          _
        // Predicated region
        $region21: #{class_block_forward.1} parent=11 // pred_check
          %p239 = pneg %p82
        $region22: #{class_block_forward.1} parent=11 // pred_check_branch
          %241 = sbr.rel (%p239) target = $region24
        $region23: #{class_block_forward.1} parent=11 // pred_region
          _
        $region24: #{class_block_forward.1} parent=11 // pred_fallthru
          _
        // Predicated region
        $region25: #{class_block_forward.1} parent=11 // pred_check
          %p242 = pneg %p103
        $region26: #{class_block_forward.1} parent=11 // pred_check_branch
          %244 = sbr.rel (%p242) target = $region28
        $region27: #{class_block_forward.1} parent=11 // pred_region
          _
        $region28: #{class_block_forward.1} parent=11 // pred_fallthru
          _
        // Predicated region
        $region29: #{class_block_forward.1} parent=11 // pred_check
          %p245 = pneg %p124
        $region30: #{class_block_forward.1} parent=11 // pred_check_branch
          %247 = sbr.rel (%p245) target = $region32
        $region31: #{class_block_forward.1} parent=11 // pred_region
          _
        $region32: #{class_block_forward.1} parent=11 // pred_fallthru
          _
        // Predicated region
        $region33: #{class_block_forward.1} parent=11 // pred_check
          %p248 = pneg %p145
        $region34: #{class_block_forward.1} parent=11 // pred_check_branch
          %250 = sbr.rel (%p248) target = $region36
        $region35: #{class_block_forward.1} parent=11 // pred_region
          _
        $region36: #{class_block_forward.1} parent=11 // pred_fallthru
          _
      $region12: #{class_block_forward.1} parent=5 // pred_fallthru
        _
      %p251 = scmp.lt.s32.totalorder %s19, 3
      // Predicated region
      $region37: #{class_block_forward.1} parent=5 // pred_check
        %p252 = pneg %p251
      $region38: #{class_block_forward.1} parent=5 // pred_check_branch
        %254 = sbr.rel (%p252) target = $region40
      $region39: #{class_block_forward.1} parent=5 // pred_region
        // Predicated region
        $region41: #{class_block_forward.1} parent=39 // pred_check
          %p255 = pneg %p165
        $region42: #{class_block_forward.1} parent=39 // pred_check_branch
          %257 = sbr.rel (%p255) target = $region44
        $region43: #{class_block_forward.1} parent=39 // pred_region
          %s258 = sand.u32 %s155, 1
          %s259 = sand.u32 %s155, 1
          %s260 = smul.addr %s259, 128
          %s261 = scalar_lea.vmem [#allocation3], %s260
          %s262 = smul.addr %s19, 4
          %s263 = scalar_lea.vmem %s6, %s262
          // Predicated region
          $region45: #{class_block_forward.1} parent=43 // pred_check
            _
          $region46: #{class_block_forward.1} parent=43 // pred_check_branch
            %265 = sbr.rel (0) target = $region48
          $region47: #{class_block_forward.1} parent=43 // pred_region
            // Predicated region
            $region49: #{class_block_forward.1} parent=47 // pred_check
              _
            $region50: #{class_block_forward.1} parent=47 // pred_check_branch
              %267 = sbr.rel target = $region52
            $region51: #{class_block_forward.1} parent=47 // pred_region
              // Predicated region
              $region64: #{class_block_forward.1} parent=51 // pred_check
                _
              $region65: #{class_block_forward.1} parent=51 // pred_check_branch
                %344 = sbr.rel (0) target = $region67
              $region66: #{class_block_forward.1} parent=51 // pred_region
                loop: start=0, step=1, limit=1
                $region68: #{class_block_forward.1} parent=66 // loop_pre_header
                  _
                $region69: #{class_block_forward.1} parent=66 // loop_header
                  %s346 = sphi 0, %s350
                  %p347 = scmp.ge.s32.totalorder %s346, 1
                  %s351 = sphi %s263, %s263
                  %s352 = sphi %s261, %s261
                $region70: #{class_block_forward.1} parent=66 // loop_header_branch
                  %349 = sbr.rel (%p347) target = $region74
                $region71: #{class_block_forward.1} parent=66 // loop_body
                  _
                $region72: #{class_block_forward.1} parent=66 // loop_footer
                  %s350 = sadd.s32 1, %s346
                $region73: #{class_block_forward.1} parent=66 // loop_footer_branch
                  %345 = sbr.rel target = $region69
                $region74: #{class_block_forward.1} parent=66 // loop_exit
                  _
                loop: start=0, step=1, limit=1
                $region75: #{class_block_forward.1} parent=66 // loop_pre_header
                  _
                $region76: #{class_block_forward.1} parent=66 // loop_header
                  %s355 = sphi 0, %s359
                  %p356 = scmp.ge.s32.totalorder %s355, 1
                  %s360 = sphi %s263, %s263
                  %s361 = sphi %s261, %s261
                $region77: #{class_block_forward.1} parent=66 // loop_header_branch
                  %358 = sbr.rel (%p356) target = $region81
                $region78: #{class_block_forward.1} parent=66 // loop_body
                  %v362 = vld [vmem:[%s360] sm:$0xf]
                  %363 = vst [vmem:[%s361] sm:$0xf] %v362
                  %v364 = vld [vmem:[%s360 + $0xc] sm:$0xf]
                  %365 = vst [vmem:[%s361 + $0x4] sm:$0xf] %v364
                  %v366 = vld [vmem:[%s360 + $0x18] sm:$0xf]
                  %367 = vst [vmem:[%s361 + $0x8] sm:$0xf] %v366
                  %v368 = vld [vmem:[%s360 + $0x24] sm:$0xf]
                  %369 = vst [vmem:[%s361 + $0xc] sm:$0xf] %v368
                  %v370 = vld [vmem:[%s360 + $0x30] sm:$0xf]
                  %371 = vst [vmem:[%s361 + $0x10] sm:$0xf] %v370
                  %v372 = vld [vmem:[%s360 + $0x3c] sm:$0xf]
                  %373 = vst [vmem:[%s361 + $0x14] sm:$0xf] %v372
                  %v374 = vld [vmem:[%s360 + $0x48] sm:$0xf]
                  %375 = vst [vmem:[%s361 + $0x18] sm:$0xf] %v374
                  %v376 = vld [vmem:[%s360 + $0x54] sm:$0xf]
                  %377 = vst [vmem:[%s361 + $0x1c] sm:$0xf] %v376
                  %v378 = vld [vmem:[%s360 + $0x60] sm:$0xf]
                  %379 = vst [vmem:[%s361 + $0x20] sm:$0xf] %v378
                  %v380 = vld [vmem:[%s360 + $0x6c] sm:$0xf]
                  %381 = vst [vmem:[%s361 + $0x24] sm:$0xf] %v380
                  %v382 = vld [vmem:[%s360 + $0x78] sm:$0xf]
                  %383 = vst [vmem:[%s361 + $0x28] sm:$0xf] %v382
                  %v384 = vld [vmem:[%s360 + $0x84] sm:$0xf]
                  %385 = vst [vmem:[%s361 + $0x2c] sm:$0xf] %v384
                  %v386 = vld [vmem:[%s360 + $0x90] sm:$0xf]
                  %387 = vst [vmem:[%s361 + $0x30] sm:$0xf] %v386
                  %v388 = vld [vmem:[%s360 + $0x9c] sm:$0xf]
                  %389 = vst [vmem:[%s361 + $0x34] sm:$0xf] %v388
                  %v390 = vld [vmem:[%s360 + $0xa8] sm:$0xf]
                  %391 = vst [vmem:[%s361 + $0x38] sm:$0xf] %v390
                  %v392 = vld [vmem:[%s360 + $0xb4] sm:$0xf]
                  %393 = vst [vmem:[%s361 + $0x3c] sm:$0xf] %v392
                  %v394 = vld [vmem:[%s360 + $0xc0] sm:$0xf]
                  %395 = vst [vmem:[%s361 + $0x40] sm:$0xf] %v394
                  %v396 = vld [vmem:[%s360 + $0xcc] sm:$0xf]
                  %397 = vst [vmem:[%s361 + $0x44] sm:$0xf] %v396
                  %v398 = vld [vmem:[%s360 + $0xd8] sm:$0xf]
                  %399 = vst [vmem:[%s361 + $0x48] sm:$0xf] %v398
                  %v400 = vld [vmem:[%s360 + $0xe4] sm:$0xf]
                  %401 = vst [vmem:[%s361 + $0x4c] sm:$0xf] %v400
                  %v402 = vld [vmem:[%s360 + $0xf0] sm:$0xf]
                  %403 = vst [vmem:[%s361 + $0x50] sm:$0xf] %v402
                  %v404 = vld [vmem:[%s360 + $0xfc] sm:$0xf]
                  %405 = vst [vmem:[%s361 + $0x54] sm:$0xf] %v404
                  %v406 = vld [vmem:[%s360 + $0x108] sm:$0xf]
                  %407 = vst [vmem:[%s361 + $0x58] sm:$0xf] %v406
                  %v408 = vld [vmem:[%s360 + $0x114] sm:$0xf]
                  %409 = vst [vmem:[%s361 + $0x5c] sm:$0xf] %v408
                  %v410 = vld [vmem:[%s360 + $0x120] sm:$0xf]
                  %411 = vst [vmem:[%s361 + $0x60] sm:$0xf] %v410
                  %v412 = vld [vmem:[%s360 + $0x12c] sm:$0xf]
                  %413 = vst [vmem:[%s361 + $0x64] sm:$0xf] %v412
                  %v414 = vld [vmem:[%s360 + $0x138] sm:$0xf]
                  %415 = vst [vmem:[%s361 + $0x68] sm:$0xf] %v414
                  %v416 = vld [vmem:[%s360 + $0x144] sm:$0xf]
                  %417 = vst [vmem:[%s361 + $0x6c] sm:$0xf] %v416
                  %v418 = vld [vmem:[%s360 + $0x150] sm:$0xf]
                  %419 = vst [vmem:[%s361 + $0x70] sm:$0xf] %v418
                  %v420 = vld [vmem:[%s360 + $0x15c] sm:$0xf]
                  %421 = vst [vmem:[%s361 + $0x74] sm:$0xf] %v420
                  %v422 = vld [vmem:[%s360 + $0x168] sm:$0xf]
                  %423 = vst [vmem:[%s361 + $0x78] sm:$0xf] %v422
                  %v424 = vld [vmem:[%s360 + $0x174] sm:$0xf]
                  %425 = vst [vmem:[%s361 + $0x7c] sm:$0xf] %v424
                $region79: #{class_block_forward.1} parent=66 // loop_footer
                  %s359 = sadd.s32 1, %s355
                $region80: #{class_block_forward.1} parent=66 // loop_footer_branch
                  %354 = sbr.rel target = $region76
                $region81: #{class_block_forward.1} parent=66 // loop_exit
                  _
              $region67: #{class_block_forward.1} parent=51 // pred_fallthru
                _
            $region52: #{class_block_forward.1} parent=47 // pred_fallthru
              _
            // Predicated region
            $region53: #{class_block_forward.1} parent=47 // pred_check
              _
            $region54: #{class_block_forward.1} parent=47 // pred_check_branch
              %269 = sbr.rel (0) target = $region56
            $region55: #{class_block_forward.1} parent=47 // pred_region
              loop: start=0, step=1, limit=1
              $region57: #{class_block_forward.1} parent=55 // loop_pre_header
                _
              $region58: #{class_block_forward.1} parent=55 // loop_header
                %s272 = sphi 0, %s276
                %p273 = scmp.ge.s32.totalorder %s272, 1
                %s277 = sphi %s263, %s263
                %s278 = sphi %s261, %s261
              $region59: #{class_block_forward.1} parent=55 // loop_header_branch
                %275 = sbr.rel (%p273) target = $region63
              $region60: #{class_block_forward.1} parent=55 // loop_body
                %v279 = vld [vmem:[%s277] sm:$0xf]
                %280 = vst [vmem:[%s278] sm:$0xf] %v279
                %v281 = vld [vmem:[%s277 + $0xc] sm:$0xf]
                %282 = vst [vmem:[%s278 + $0x4] sm:$0xf] %v281
                %v283 = vld [vmem:[%s277 + $0x18] sm:$0xf]
                %284 = vst [vmem:[%s278 + $0x8] sm:$0xf] %v283
                %v285 = vld [vmem:[%s277 + $0x24] sm:$0xf]
                %286 = vst [vmem:[%s278 + $0xc] sm:$0xf] %v285
                %v287 = vld [vmem:[%s277 + $0x30] sm:$0xf]
                %288 = vst [vmem:[%s278 + $0x10] sm:$0xf] %v287
                %v289 = vld [vmem:[%s277 + $0x3c] sm:$0xf]
                %290 = vst [vmem:[%s278 + $0x14] sm:$0xf] %v289
                %v291 = vld [vmem:[%s277 + $0x48] sm:$0xf]
                %292 = vst [vmem:[%s278 + $0x18] sm:$0xf] %v291
                %v293 = vld [vmem:[%s277 + $0x54] sm:$0xf]
                %294 = vst [vmem:[%s278 + $0x1c] sm:$0xf] %v293
                %v295 = vld [vmem:[%s277 + $0x60] sm:$0xf]
                %296 = vst [vmem:[%s278 + $0x20] sm:$0xf] %v295
                %v297 = vld [vmem:[%s277 + $0x6c] sm:$0xf]
                %298 = vst [vmem:[%s278 + $0x24] sm:$0xf] %v297
                %v299 = vld [vmem:[%s277 + $0x78] sm:$0xf]
                %300 = vst [vmem:[%s278 + $0x28] sm:$0xf] %v299
                %v301 = vld [vmem:[%s277 + $0x84] sm:$0xf]
                %302 = vst [vmem:[%s278 + $0x2c] sm:$0xf] %v301
                %v303 = vld [vmem:[%s277 + $0x90] sm:$0xf]
                %304 = vst [vmem:[%s278 + $0x30] sm:$0xf] %v303
                %v305 = vld [vmem:[%s277 + $0x9c] sm:$0xf]
                %306 = vst [vmem:[%s278 + $0x34] sm:$0xf] %v305
                %v307 = vld [vmem:[%s277 + $0xa8] sm:$0xf]
                %308 = vst [vmem:[%s278 + $0x38] sm:$0xf] %v307
                %v309 = vld [vmem:[%s277 + $0xb4] sm:$0xf]
                %310 = vst [vmem:[%s278 + $0x3c] sm:$0xf] %v309
                %v311 = vld [vmem:[%s277 + $0xc0] sm:$0xf]
                %312 = vst [vmem:[%s278 + $0x40] sm:$0xf] %v311
                %v313 = vld [vmem:[%s277 + $0xcc] sm:$0xf]
                %314 = vst [vmem:[%s278 + $0x44] sm:$0xf] %v313
                %v315 = vld [vmem:[%s277 + $0xd8] sm:$0xf]
                %316 = vst [vmem:[%s278 + $0x48] sm:$0xf] %v315
                %v317 = vld [vmem:[%s277 + $0xe4] sm:$0xf]
                %318 = vst [vmem:[%s278 + $0x4c] sm:$0xf] %v317
                %v319 = vld [vmem:[%s277 + $0xf0] sm:$0xf]
                %320 = vst [vmem:[%s278 + $0x50] sm:$0xf] %v319
                %v321 = vld [vmem:[%s277 + $0xfc] sm:$0xf]
                %322 = vst [vmem:[%s278 + $0x54] sm:$0xf] %v321
                %v323 = vld [vmem:[%s277 + $0x108] sm:$0xf]
                %324 = vst [vmem:[%s278 + $0x58] sm:$0xf] %v323
                %v325 = vld [vmem:[%s277 + $0x114] sm:$0xf]
                %326 = vst [vmem:[%s278 + $0x5c] sm:$0xf] %v325
                %v327 = vld [vmem:[%s277 + $0x120] sm:$0xf]
                %328 = vst [vmem:[%s278 + $0x60] sm:$0xf] %v327
                %v329 = vld [vmem:[%s277 + $0x12c] sm:$0xf]
                %330 = vst [vmem:[%s278 + $0x64] sm:$0xf] %v329
                %v331 = vld [vmem:[%s277 + $0x138] sm:$0xf]
                %332 = vst [vmem:[%s278 + $0x68] sm:$0xf] %v331
                %v333 = vld [vmem:[%s277 + $0x144] sm:$0xf]
                %334 = vst [vmem:[%s278 + $0x6c] sm:$0xf] %v333
                %v335 = vld [vmem:[%s277 + $0x150] sm:$0xf]
                %336 = vst [vmem:[%s278 + $0x70] sm:$0xf] %v335
                %v337 = vld [vmem:[%s277 + $0x15c] sm:$0xf]
                %338 = vst [vmem:[%s278 + $0x74] sm:$0xf] %v337
                %v339 = vld [vmem:[%s277 + $0x168] sm:$0xf]
                %340 = vst [vmem:[%s278 + $0x78] sm:$0xf] %v339
                %v341 = vld [vmem:[%s277 + $0x174] sm:$0xf]
                %342 = vst [vmem:[%s278 + $0x7c] sm:$0xf] %v341
              $region61: #{class_block_forward.1} parent=55 // loop_footer
                %s276 = sadd.s32 1, %s272
              $region62: #{class_block_forward.1} parent=55 // loop_footer_branch
                %271 = sbr.rel target = $region58
              $region63: #{class_block_forward.1} parent=55 // loop_exit
                _
            $region56: #{class_block_forward.1} parent=47 // pred_fallthru
              _
          $region48: #{class_block_forward.1} parent=43 // pred_fallthru
            _
          %426 = vnop
        $region44: #{class_block_forward.1} parent=39 // pred_fallthru
          _
      $region40: #{class_block_forward.1} parent=5 // pred_fallthru
        _
      %p427 = scmp.le.s32.totalorder 1, %s19
      %p428 = scmp.lt.s32.totalorder %s19, 4
      %p429 = pnand %p427, %p428
      %p430 = pneg %p429
      // Predicated region
      $region82: #{class_block_forward.1} parent=5 // pred_check
        _
      $region83: #{class_block_forward.1} parent=5 // pred_check_branch
        %432 = sbr.rel (%p429) target = $region85
      $region84: #{class_block_forward.1} parent=5 // pred_region
        %s433 = ssub.s32 %s19, 1
        %s434 = sand.u32 %s158, 1
        %s435 = sand.u32 %s158, 1
        %s436 = smul.addr %s435, 128
        %s437 = scalar_lea.vmem [#allocation3], %s436
        // Predicated region
        $region86: #{class_block_forward.1} parent=84 // pred_check
          %p438 = pneg %p171
        $region87: #{class_block_forward.1} parent=84 // pred_check_branch
          %440 = sbr.rel (%p438) target = $region89
        $region88: #{class_block_forward.1} parent=84 // pred_region
          _
        $region89: #{class_block_forward.1} parent=84 // pred_fallthru
          _
        %p441 = pneg %p40
        %p442 = pneg %p37
        %p443 = pneg %p61
        %p444 = pneg %p58
        %p445 = pneg %p82
        %p446 = pneg %p79
        %p447 = pneg %p103
        %p448 = pneg %p100
        %p449 = pneg %p124
        %p450 = pneg %p121
        %p451 = pneg %p145
        %p452 = pneg %p142
        %s453 = sand.u32 %s158, 1
        %s454 = sand.u32 %s158, 1
        %s455 = smul.addr %s454, 128
        %s456 = scalar_lea.vmem [#allocation3], %s455
        %p457 = pneg %p171
        %p458 = pneg %p168
        %p459 = pneg %p192
        %p460 = pneg %p189
        %p461 = pneg %p218
        %p462 = pneg %p215
        %s463 = sand.u32 %s205, 1
        %s464 = scalar_lea.sflag [#allocation7], %s463
        %s465 = sand.u32 %s205, 1
        %s466 = smul.addr %s465, 64
        %s467 = scalar_lea.vmem [#allocation6], %s466
        %p469 = scmp.eq.s32.totalorder %s24, 0
        // Predicated region
        $region90: #{class_block_forward.1} parent=84 // pred_check
          %p470 = pneg %p469
        $region91: #{class_block_forward.1} parent=84 // pred_check_branch
          %472 = sbr.rel (%p470) target = $region93
        $region92: #{class_block_forward.1} parent=84 // pred_region
          %v473 = vld [vmem:[%s0] sm:$0xff]
          %v474 = vld [vmem:[%s0 + $0x8] sm:$0xff]
          %v475 = vld [vmem:[%s0 + $0x10] sm:$0xff]
          %v476 = vld [vmem:[%s0 + $0x18] sm:$0xff]
          %v477 = vld [vmem:[%s0 + $0x20] sm:$0xff]
          %v478 = vld [vmem:[%s0 + $0x28] sm:$0xff]
          %v479 = vld [vmem:[%s0 + $0x30] sm:$0xff]
          %v480 = vld [vmem:[%s0 + $0x38] sm:$0xff]
          %v481 = vld [vmem:[%s0 + $0x40] sm:$0xff]
          %v482 = vld [vmem:[%s0 + $0x48] sm:$0xff]
          %v483 = vld [vmem:[%s0 + $0x50] sm:$0xff]
          %v484 = vld [vmem:[%s0 + $0x58] sm:$0xff]
          %v485 = vld [vmem:[%s0 + $0x60] sm:$0xff]
          %v486 = vld [vmem:[%s0 + $0x68] sm:$0xff]
          %v487 = vld [vmem:[%s0 + $0x70] sm:$0xff]
          %v488 = vld [vmem:[%s0 + $0x78] sm:$0xff]
          %v489 = vadd.f32 %v473, %v475
          %v490 = vadd.f32 %v489, %v477
          %v491 = vadd.f32 %v490, %v479
          %v492 = vadd.f32 %v491, %v481
          %v493 = vadd.f32 %v492, %v483
          %v494 = vadd.f32 %v493, %v485
          %v495 = vadd.f32 %v494, %v487
          %v496 = vrot.slane %v495, 4
          %v497 = vadd.f32 %v495, %v496
          %v498 = vrot.slane %v497, 2
          %v499 = vadd.f32 %v497, %v498
          %v500 = vrot.slane %v499, 1
          %v501 = vadd.f32 %v499, %v500
          %v502 = vadd.f32 %v474, %v476
          %v503 = vadd.f32 %v502, %v478
          %v504 = vadd.f32 %v503, %v480
          %v505 = vadd.f32 %v504, %v482
          %v506 = vadd.f32 %v505, %v484
          %v507 = vadd.f32 %v506, %v486
          %v508 = vadd.f32 %v507, %v488
          %v509 = vrot.slane %v508, 4
          %v510 = vadd.f32 %v508, %v509
          %v511 = vrot.slane %v510, 2
          %v512 = vadd.f32 %v510, %v511
          %v513 = vrot.slane %v512, 1
          %v514 = vadd.f32 %v512, %v513
          %v515 = vmul.f32 %v501, 0.015625
          %v516 = vmul.f32 %v514, 0.015625
          %v517 = vsub.f32 %v473, %v515
          %v518 = vsub.f32 %v474, %v516
          %v519 = vsub.f32 %v475, %v515
          %v520 = vsub.f32 %v476, %v516
          %v521 = vsub.f32 %v477, %v515
          %v522 = vsub.f32 %v478, %v516
          %v523 = vsub.f32 %v479, %v515
          %v524 = vsub.f32 %v480, %v516
          %v525 = vsub.f32 %v481, %v515
          %v526 = vsub.f32 %v482, %v516
          %v527 = vsub.f32 %v483, %v515
          %v528 = vsub.f32 %v484, %v516
          %v529 = vsub.f32 %v485, %v515
          %v530 = vsub.f32 %v486, %v516
          %v531 = vsub.f32 %v487, %v515
          %v532 = vsub.f32 %v488, %v516
          %v533 = vmul.f32 %v517, %v517
          %v534 = vmul.f32 %v518, %v518
          %v535 = vmul.f32 %v519, %v519
          %v536 = vmul.f32 %v520, %v520
          %v537 = vmul.f32 %v521, %v521
          %v538 = vmul.f32 %v522, %v522
          %v539 = vmul.f32 %v523, %v523
          %v540 = vmul.f32 %v524, %v524
          %v541 = vmul.f32 %v525, %v525
          %v542 = vmul.f32 %v526, %v526
          %v543 = vmul.f32 %v527, %v527
          %v544 = vmul.f32 %v528, %v528
          %v545 = vmul.f32 %v529, %v529
          %v546 = vmul.f32 %v530, %v530
          %v547 = vmul.f32 %v531, %v531
          %v548 = vmul.f32 %v532, %v532
          %v549 = vadd.f32 %v533, %v535
          %v550 = vadd.f32 %v549, %v537
          %v551 = vadd.f32 %v550, %v539
          %v552 = vadd.f32 %v551, %v541
          %v553 = vadd.f32 %v552, %v543
          %v554 = vadd.f32 %v553, %v545
          %v555 = vadd.f32 %v554, %v547
          %v556 = vrot.slane %v555, 4
          %v557 = vadd.f32 %v555, %v556
          %v558 = vrot.slane %v557, 2
          %v559 = vadd.f32 %v557, %v558
          %v560 = vrot.slane %v559, 1
          %v561 = vadd.f32 %v559, %v560
          %v562 = vadd.f32 %v534, %v536
          %v563 = vadd.f32 %v562, %v538
          %v564 = vadd.f32 %v563, %v540
          %v565 = vadd.f32 %v564, %v542
          %v566 = vadd.f32 %v565, %v544
          %v567 = vadd.f32 %v566, %v546
          %v568 = vadd.f32 %v567, %v548
          %v569 = vrot.slane %v568, 4
          %v570 = vadd.f32 %v568, %v569
          %v571 = vrot.slane %v570, 2
          %v572 = vadd.f32 %v570, %v571
          %v573 = vrot.slane %v572, 1
          %v574 = vadd.f32 %v572, %v573
          %v575 = vmul.f32 %v561, 0.015625
          %v576 = vmul.f32 %v574, 0.015625
          %v577 = vadd.f32 %v575, 1e-05
          %v578 = vadd.f32 %v576, 1e-05
          %v579 = vrsqrt.pop %v577
          %v580 = vrsqrt.pop %v578
          %v581 = vmul.f32 %v517, %v579
          %v582 = vmul.f32 %v518, %v580
          %v583 = vmul.f32 %v519, %v579
          %v584 = vmul.f32 %v520, %v580
          %v585 = vmul.f32 %v521, %v579
          %v586 = vmul.f32 %v522, %v580
          %v587 = vmul.f32 %v523, %v579
          %v588 = vmul.f32 %v524, %v580
          %v589 = vmul.f32 %v525, %v579
          %v590 = vmul.f32 %v526, %v580
          %v591 = vmul.f32 %v527, %v579
          %v592 = vmul.f32 %v528, %v580
          %v593 = vmul.f32 %v529, %v579
          %v594 = vmul.f32 %v530, %v580
          %v595 = vmul.f32 %v531, %v579
          %v596 = vmul.f32 %v532, %v580
          %v597 = vld [vmem:[%s1] sm:$0x3]
          %v599 = vlaneseq
          %v600 = vshrl.u32 %v599, 7
          %v601 = vsub.s32 0, %v600
          %v602 = vrot.slane %v597, %v601
          %v603 = vlaneseq
          %v604 = vshrl.u32 %v603, 7
          %v605 = vsub.s32 1, %v604
          %v606 = vrot.slane %v597, %v605
          %v609 = vmul.f32 %v581, %v602
          %v610 = vmul.f32 %v582, %v606
          %v611 = vmul.f32 %v583, %v602
          %v612 = vmul.f32 %v584, %v606
          %v613 = vmul.f32 %v585, %v602
          %v614 = vmul.f32 %v586, %v606
          %v615 = vmul.f32 %v587, %v602
          %v616 = vmul.f32 %v588, %v606
          %v617 = vmul.f32 %v589, %v602
          %v618 = vmul.f32 %v590, %v606
          %v619 = vmul.f32 %v591, %v602
          %v620 = vmul.f32 %v592, %v606
          %v621 = vmul.f32 %v593, %v602
          %v622 = vmul.f32 %v594, %v606
          %v623 = vmul.f32 %v595, %v602
          %v624 = vmul.f32 %v596, %v606
          %v625 = vld [vmem:[%s2] sm:$0x3]
          %v627 = vlaneseq
          %v628 = vshrl.u32 %v627, 7
          %v629 = vsub.s32 0, %v628
          %v630 = vrot.slane %v625, %v629
          %v631 = vlaneseq
          %v632 = vshrl.u32 %v631, 7
          %v633 = vsub.s32 1, %v632
          %v634 = vrot.slane %v625, %v633
          %v637 = vadd.f32 %v609, %v630
          %v638 = vadd.f32 %v610, %v634
          %v639 = vadd.f32 %v611, %v630
          %v640 = vadd.f32 %v612, %v634
          %v641 = vadd.f32 %v613, %v630
          %v642 = vadd.f32 %v614, %v634
          %v643 = vadd.f32 %v615, %v630
          %v644 = vadd.f32 %v616, %v634
          %v645 = vadd.f32 %v617, %v630
          %v646 = vadd.f32 %v618, %v634
          %v647 = vadd.f32 %v619, %v630
          %v648 = vadd.f32 %v620, %v634
          %v649 = vadd.f32 %v621, %v630
          %v650 = vadd.f32 %v622, %v634
          %v651 = vadd.f32 %v623, %v630
          %v652 = vadd.f32 %v624, %v634
          %v653 = vmax.f32 %v637, 0.0
          %v654 = vmax.f32 %v638, 0.0
          %v655 = vmax.f32 %v639, 0.0
          %v656 = vmax.f32 %v640, 0.0
          %v657 = vmax.f32 %v641, 0.0
          %v658 = vmax.f32 %v642, 0.0
          %v659 = vmax.f32 %v643, 0.0
          %v660 = vmax.f32 %v644, 0.0
          %v661 = vmax.f32 %v645, 0.0
          %v662 = vmax.f32 %v646, 0.0
          %v663 = vmax.f32 %v647, 0.0
          %v664 = vmax.f32 %v648, 0.0
          %v665 = vmax.f32 %v649, 0.0
          %v666 = vmax.f32 %v650, 0.0
          %v667 = vmax.f32 %v651, 0.0
          %v668 = vmax.f32 %v652, 0.0
          %v669 = vpack.c.bf16 %v655, %v653
          %v670 = vpack.c.bf16 %v656, %v654
          %v671 = vpack.c.bf16 %v659, %v657
          %v672 = vpack.c.bf16 %v660, %v658
          %v673 = vpack.c.bf16 %v663, %v661
          %v674 = vpack.c.bf16 %v664, %v662
          %v675 = vpack.c.bf16 %v667, %v665
          %v676 = vpack.c.bf16 %v668, %v666
          %v677 = vld [vmem:[%s3] sm:$0xff]
          %v678 = vld [vmem:[%s3 + $0x8] sm:$0xff]
          %v679 = vld [vmem:[%s3 + $0x10] sm:$0xff]
          %v680 = vld [vmem:[%s3 + $0x18] sm:$0xff]
          %v681 = vld [vmem:[%s3 + $0x20] sm:$0xff]
          %v682 = vld [vmem:[%s3 + $0x28] sm:$0xff]
          %v683 = vld [vmem:[%s3 + $0x30] sm:$0xff]
          %v684 = vld [vmem:[%s3 + $0x38] sm:$0xff]
          %v685 = vld [vmem:[%s3 + $0x40] sm:$0xff]
          %v686 = vld [vmem:[%s3 + $0x48] sm:$0xff]
          %v687 = vld [vmem:[%s3 + $0x50] sm:$0xff]
          %v688 = vld [vmem:[%s3 + $0x58] sm:$0xff]
          %v689 = vld [vmem:[%s3 + $0x60] sm:$0xff]
          %v690 = vld [vmem:[%s3 + $0x68] sm:$0xff]
          %v691 = vld [vmem:[%s3 + $0x70] sm:$0xff]
          %v692 = vld [vmem:[%s3 + $0x78] sm:$0xff]
          %v693 = vld [vmem:[%s3 + $0x80] sm:$0xff]
          %v694 = vld [vmem:[%s3 + $0x88] sm:$0xff]
          %v695 = vld [vmem:[%s3 + $0x90] sm:$0xff]
          %v696 = vld [vmem:[%s3 + $0x98] sm:$0xff]
          %v697 = vld [vmem:[%s3 + $0xa0] sm:$0xff]
          %v698 = vld [vmem:[%s3 + $0xa8] sm:$0xff]
          %v699 = vld [vmem:[%s3 + $0xb0] sm:$0xff]
          %v700 = vld [vmem:[%s3 + $0xb8] sm:$0xff]
          %v701 = vld [vmem:[%s3 + $0xc0] sm:$0xff]
          %v702 = vld [vmem:[%s3 + $0xc8] sm:$0xff]
          %v703 = vld [vmem:[%s3 + $0xd0] sm:$0xff]
          %v704 = vld [vmem:[%s3 + $0xd8] sm:$0xff]
          %v705 = vld [vmem:[%s3 + $0xe0] sm:$0xff]
          %v706 = vld [vmem:[%s3 + $0xe8] sm:$0xff]
          %v707 = vld [vmem:[%s3 + $0xf0] sm:$0xff]
          %v708 = vld [vmem:[%s3 + $0xf8] sm:$0xff]
          %v741 = vunpack.c.l.b16 %v677
          %v742 = vunpack.c.h.b16 %v677
          %v743 = vunpack.c.l.b16 %v678
          %v744 = vunpack.c.h.b16 %v678
          %v745 = vunpack.c.l.b16 %v679
          %v746 = vunpack.c.h.b16 %v679
          %v747 = vunpack.c.l.b16 %v680
          %v748 = vunpack.c.h.b16 %v680
          %v749 = vunpack.c.l.b16 %v681
          %v750 = vunpack.c.h.b16 %v681
          %v751 = vunpack.c.l.b16 %v682
          %v752 = vunpack.c.h.b16 %v682
          %v753 = vunpack.c.l.b16 %v683
          %v754 = vunpack.c.h.b16 %v683
          %v755 = vunpack.c.l.b16 %v684
          %v756 = vunpack.c.h.b16 %v684
          %v757 = vunpack.c.l.b16 %v685
          %v758 = vunpack.c.h.b16 %v685
          %v759 = vunpack.c.l.b16 %v686
          %v760 = vunpack.c.h.b16 %v686
          %v761 = vunpack.c.l.b16 %v687
          %v762 = vunpack.c.h.b16 %v687
          %v763 = vunpack.c.l.b16 %v688
          %v764 = vunpack.c.h.b16 %v688
          %v765 = vunpack.c.l.b16 %v689
          %v766 = vunpack.c.h.b16 %v689
          %v767 = vunpack.c.l.b16 %v690
          %v768 = vunpack.c.h.b16 %v690
          %v769 = vunpack.c.l.b16 %v691
          %v770 = vunpack.c.h.b16 %v691
          %v771 = vunpack.c.l.b16 %v692
          %v772 = vunpack.c.h.b16 %v692
          %v773 = vunpack.c.l.b16 %v693
          %v774 = vunpack.c.h.b16 %v693
          %v775 = vunpack.c.l.b16 %v694
          %v776 = vunpack.c.h.b16 %v694
          %v777 = vunpack.c.l.b16 %v695
          %v778 = vunpack.c.h.b16 %v695
          %v779 = vunpack.c.l.b16 %v696
          %v780 = vunpack.c.h.b16 %v696
          %v781 = vunpack.c.l.b16 %v697
          %v782 = vunpack.c.h.b16 %v697
          %v783 = vunpack.c.l.b16 %v698
          %v784 = vunpack.c.h.b16 %v698
          %v785 = vunpack.c.l.b16 %v699
          %v786 = vunpack.c.h.b16 %v699
          %v787 = vunpack.c.l.b16 %v700
          %v788 = vunpack.c.h.b16 %v700
          %v789 = vunpack.c.l.b16 %v701
          %v790 = vunpack.c.h.b16 %v701
          %v791 = vunpack.c.l.b16 %v702
          %v792 = vunpack.c.h.b16 %v702
          %v793 = vunpack.c.l.b16 %v703
          %v794 = vunpack.c.h.b16 %v703
          %v795 = vunpack.c.l.b16 %v704
          %v796 = vunpack.c.h.b16 %v704
          %v797 = vunpack.c.l.b16 %v705
          %v798 = vunpack.c.h.b16 %v705
          %v799 = vunpack.c.l.b16 %v706
          %v800 = vunpack.c.h.b16 %v706
          %v801 = vunpack.c.l.b16 %v707
          %v802 = vunpack.c.h.b16 %v707
          %v803 = vunpack.c.l.b16 %v708
          %v804 = vunpack.c.h.b16 %v708
          %v805 = vpack.c.b16 %v743, %v741
          %v806 = vpack.c.b16 %v744, %v742
          %v807 = vpack.c.b16 %v747, %v745
          %v808 = vpack.c.b16 %v748, %v746
          %v809 = vpack.c.b16 %v751, %v749
          %v810 = vpack.c.b16 %v752, %v750
          %v811 = vpack.c.b16 %v755, %v753
          %v812 = vpack.c.b16 %v756, %v754
          %v813 = vpack.c.b16 %v759, %v757
          %v814 = vpack.c.b16 %v760, %v758
          %v815 = vpack.c.b16 %v763, %v761
          %v816 = vpack.c.b16 %v764, %v762
          %v817 = vpack.c.b16 %v767, %v765
          %v818 = vpack.c.b16 %v768, %v766
          %v819 = vpack.c.b16 %v771, %v769
          %v820 = vpack.c.b16 %v772, %v770
          %v821 = vpack.c.b16 %v775, %v773
          %v822 = vpack.c.b16 %v776, %v774
          %v823 = vpack.c.b16 %v779, %v777
          %v824 = vpack.c.b16 %v780, %v778
          %v825 = vpack.c.b16 %v783, %v781
          %v826 = vpack.c.b16 %v784, %v782
          %v827 = vpack.c.b16 %v787, %v785
          %v828 = vpack.c.b16 %v788, %v786
          %v829 = vpack.c.b16 %v791, %v789
          %v830 = vpack.c.b16 %v792, %v790
          %v831 = vpack.c.b16 %v795, %v793
          %v832 = vpack.c.b16 %v796, %v794
          %v833 = vpack.c.b16 %v799, %v797
          %v834 = vpack.c.b16 %v800, %v798
          %v835 = vpack.c.b16 %v803, %v801
          %v836 = vpack.c.b16 %v804, %v802
          %869 = vmatprep.subr.bf16.mxu0 %v806
          %870 = vmatpush1.bf16.msra.mxu0 %v805
          %871 = vmatprep.subr.bf16.mxu0 %v808
          %872 = vmatpush1.bf16.msra.mxu0 %v807
          %873 = vmatprep.subr.bf16.mxu0 %v810
          %874 = vmatpush1.bf16.msra.mxu0 %v809
          %875 = vmatprep.subr.bf16.mxu0 %v812
          %876 = vmatpush1.bf16.msra.mxu0 %v811
          %877 = vmatprep.subr.bf16.mxu0 %v814
          %878 = vmatpush1.bf16.msra.mxu0 %v813
          %879 = vmatprep.subr.bf16.mxu0 %v816
          %880 = vmatpush1.bf16.msra.mxu0 %v815
          %881 = vmatprep.subr.bf16.mxu0 %v818
          %882 = vmatpush1.bf16.msra.mxu0 %v817
          %883 = vmatprep.subr.bf16.mxu0 %v820
          %884 = vmatpush1.bf16.msra.mxu0 %v819
          %885 = vmatprep.subr.bf16.mxu0 %v822
          %886 = vmatpush1.bf16.msra.mxu0 %v821
          %887 = vmatprep.subr.bf16.mxu0 %v824
          %888 = vmatpush1.bf16.msra.mxu0 %v823
          %889 = vmatprep.subr.bf16.mxu0 %v826
          %890 = vmatpush1.bf16.msra.mxu0 %v825
          %891 = vmatprep.subr.bf16.mxu0 %v828
          %892 = vmatpush1.bf16.msra.mxu0 %v827
          %893 = vmatprep.subr.bf16.mxu0 %v830
          %894 = vmatpush1.bf16.msra.mxu0 %v829
          %895 = vmatprep.subr.bf16.mxu0 %v832
          %896 = vmatpush1.bf16.msra.mxu0 %v831
          %897 = vmatprep.subr.bf16.mxu0 %v834
          %898 = vmatpush1.bf16.msra.mxu0 %v833
          %899 = vmatprep.subr.bf16.mxu0 %v836
          %900 = vmatpush1.bf16.msra.mxu0 %v835
          %901 = vmatprep.mubr.bf16.mxu0 %v670
          %902 = vmatmul.mubr.bf16.gmra.mrb[0].mxu0 %v669
          %v903 = vpop.f32.mrb[0].mxu0
          %v904 = vadd.f32 0.0, %v903
          %v905 = vpop.f32.mrb[0].mxu0
          %v906 = vadd.f32 0.0, %v905
          %v907 = vpop.f32.mrb[0].mxu0
          %v908 = vadd.f32 0.0, %v907
          %v909 = vpop.f32.mrb[0].mxu0
          %v910 = vadd.f32 0.0, %v909
          %911 = vmatprep.mubr.bf16.mxu0 %v672
          %912 = vmatmul.mubr.bf16.gmra.mrb[0].mxu0 %v671
          %v913 = vpop.f32.mrb[0].mxu0
          %v914 = vadd.f32 0.0, %v913
          %v915 = vpop.f32.mrb[0].mxu0
          %v916 = vadd.f32 0.0, %v915
          %v917 = vpop.f32.mrb[0].mxu0
          %v918 = vadd.f32 0.0, %v917
          %v919 = vpop.f32.mrb[0].mxu0
          %v920 = vadd.f32 0.0, %v919
          %921 = vmatprep.mubr.bf16.mxu0 %v674
          %922 = vmatmul.mubr.bf16.gmra.mrb[0].mxu0 %v673
          %v923 = vpop.f32.mrb[0].mxu0
          %v924 = vadd.f32 0.0, %v923
          %v925 = vpop.f32.mrb[0].mxu0
          %v926 = vadd.f32 0.0, %v925
          %v927 = vpop.f32.mrb[0].mxu0
          %v928 = vadd.f32 0.0, %v927
          %v929 = vpop.f32.mrb[0].mxu0
          %v930 = vadd.f32 0.0, %v929
          %931 = vmatprep.mubr.bf16.mxu0 %v676
          %932 = vmatmul.mubr.bf16.gmra.mrb[0].mxu0 %v675
          %v933 = vpop.f32.mrb[0].mxu0
          %v934 = vadd.f32 0.0, %v933
          %v935 = vpop.f32.mrb[0].mxu0
          %v936 = vadd.f32 0.0, %v935
          %v937 = vpop.f32.mrb[0].mxu0
          %v938 = vadd.f32 0.0, %v937
          %v939 = vpop.f32.mrb[0].mxu0
          %v940 = vadd.f32 0.0, %v939
          %941 = vdwg.mxu0
          %v942 = vadd.f32 %v904, %v908
          %v943 = vadd.f32 %v942, %v914
          %v944 = vadd.f32 %v943, %v918
          %v945 = vadd.f32 %v944, %v924
          %v946 = vadd.f32 %v945, %v928
          %v947 = vadd.f32 %v946, %v934
          %v948 = vadd.f32 %v947, %v938
          %v949 = vrot.slane %v948, 4
          %v950 = vadd.f32 %v948, %v949
          %v951 = vrot.slane %v950, 2
          %v952 = vadd.f32 %v950, %v951
          %v953 = vrot.slane %v952, 1
          %v954 = vadd.f32 %v952, %v953
          %v955 = vadd.f32 %v906, %v910
          %v956 = vadd.f32 %v955, %v916
          %v957 = vadd.f32 %v956, %v920
          %v958 = vadd.f32 %v957, %v926
          %v959 = vadd.f32 %v958, %v930
          %v960 = vadd.f32 %v959, %v936
          %v961 = vadd.f32 %v960, %v940
          %v962 = vrot.slane %v961, 4
          %v963 = vadd.f32 %v961, %v962
          %v964 = vrot.slane %v963, 2
          %v965 = vadd.f32 %v963, %v964
          %v966 = vrot.slane %v965, 1
          %v967 = vadd.f32 %v965, %v966
          %v968 = vmul.f32 %v954, 0.015625
          %v969 = vmul.f32 %v967, 0.015625
          %v970 = vsub.f32 %v904, %v968
          %v971 = vsub.f32 %v906, %v969
          %v972 = vsub.f32 %v908, %v968
          %v973 = vsub.f32 %v910, %v969
          %v974 = vsub.f32 %v914, %v968
          %v975 = vsub.f32 %v916, %v969
          %v976 = vsub.f32 %v918, %v968
          %v977 = vsub.f32 %v920, %v969
          %v978 = vsub.f32 %v924, %v968
          %v979 = vsub.f32 %v926, %v969
          %v980 = vsub.f32 %v928, %v968
          %v981 = vsub.f32 %v930, %v969
          %v982 = vsub.f32 %v934, %v968
          %v983 = vsub.f32 %v936, %v969
          %v984 = vsub.f32 %v938, %v968
          %v985 = vsub.f32 %v940, %v969
          %v986 = vmul.f32 %v970, %v970
          %v987 = vmul.f32 %v971, %v971
          %v988 = vmul.f32 %v972, %v972
          %v989 = vmul.f32 %v973, %v973
          %v990 = vmul.f32 %v974, %v974
          %v991 = vmul.f32 %v975, %v975
          %v992 = vmul.f32 %v976, %v976
          %v993 = vmul.f32 %v977, %v977
          %v994 = vmul.f32 %v978, %v978
          %v995 = vmul.f32 %v979, %v979
          %v996 = vmul.f32 %v980, %v980
          %v997 = vmul.f32 %v981, %v981
          %v998 = vmul.f32 %v982, %v982
          %v999 = vmul.f32 %v983, %v983
          %v1000 = vmul.f32 %v984, %v984
          %v1001 = vmul.f32 %v985, %v985
          %v1002 = vadd.f32 %v986, %v988
          %v1003 = vadd.f32 %v1002, %v990
          %v1004 = vadd.f32 %v1003, %v992
          %v1005 = vadd.f32 %v1004, %v994
          %v1006 = vadd.f32 %v1005, %v996
          %v1007 = vadd.f32 %v1006, %v998
          %v1008 = vadd.f32 %v1007, %v1000
          %v1009 = vrot.slane %v1008, 4
          %v1010 = vadd.f32 %v1008, %v1009
          %v1011 = vrot.slane %v1010, 2
          %v1012 = vadd.f32 %v1010, %v1011
          %v1013 = vrot.slane %v1012, 1
          %v1014 = vadd.f32 %v1012, %v1013
          %v1015 = vadd.f32 %v987, %v989
          %v1016 = vadd.f32 %v1015, %v991
          %v1017 = vadd.f32 %v1016, %v993
          %v1018 = vadd.f32 %v1017, %v995
          %v1019 = vadd.f32 %v1018, %v997
          %v1020 = vadd.f32 %v1019, %v999
          %v1021 = vadd.f32 %v1020, %v1001
          %v1022 = vrot.slane %v1021, 4
          %v1023 = vadd.f32 %v1021, %v1022
          %v1024 = vrot.slane %v1023, 2
          %v1025 = vadd.f32 %v1023, %v1024
          %v1026 = vrot.slane %v1025, 1
          %v1027 = vadd.f32 %v1025, %v1026
          %v1028 = vmul.f32 %v1014, 0.015625
          %v1029 = vmul.f32 %v1027, 0.015625
          %v1030 = vadd.f32 %v1028, 1e-05
          %v1031 = vadd.f32 %v1029, 1e-05
          %v1032 = vrsqrt.pop %v1030
          %v1033 = vrsqrt.pop %v1031
          %v1034 = vmul.f32 %v970, %v1032
          %v1035 = vmul.f32 %v971, %v1033
          %v1036 = vmul.f32 %v972, %v1032
          %v1037 = vmul.f32 %v973, %v1033
          %v1038 = vmul.f32 %v974, %v1032
          %v1039 = vmul.f32 %v975, %v1033
          %v1040 = vmul.f32 %v976, %v1032
          %v1041 = vmul.f32 %v977, %v1033
          %v1042 = vmul.f32 %v978, %v1032
          %v1043 = vmul.f32 %v979, %v1033
          %v1044 = vmul.f32 %v980, %v1032
          %v1045 = vmul.f32 %v981, %v1033
          %v1046 = vmul.f32 %v982, %v1032
          %v1047 = vmul.f32 %v983, %v1033
          %v1048 = vmul.f32 %v984, %v1032
          %v1049 = vmul.f32 %v985, %v1033
          %v1050 = vld [vmem:[%s4] sm:$0x3]
          %v1052 = vlaneseq
          %v1053 = vshrl.u32 %v1052, 7
          %v1054 = vsub.s32 0, %v1053
          %v1055 = vrot.slane %v1050, %v1054
          %v1056 = vlaneseq
          %v1057 = vshrl.u32 %v1056, 7
          %v1058 = vsub.s32 1, %v1057
          %v1059 = vrot.slane %v1050, %v1058
          %v1062 = vmul.f32 %v1034, %v1055
          %v1063 = vmul.f32 %v1035, %v1059
          %v1064 = vmul.f32 %v1036, %v1055
          %v1065 = vmul.f32 %v1037, %v1059
          %v1066 = vmul.f32 %v1038, %v1055
          %v1067 = vmul.f32 %v1039, %v1059
          %v1068 = vmul.f32 %v1040, %v1055
          %v1069 = vmul.f32 %v1041, %v1059
          %v1070 = vmul.f32 %v1042, %v1055
          %v1071 = vmul.f32 %v1043, %v1059
          %v1072 = vmul.f32 %v1044, %v1055
          %v1073 = vmul.f32 %v1045, %v1059
          %v1074 = vmul.f32 %v1046, %v1055
          %v1075 = vmul.f32 %v1047, %v1059
          %v1076 = vmul.f32 %v1048, %v1055
          %v1077 = vmul.f32 %v1049, %v1059
          %v1078 = vld [vmem:[%s5] sm:$0x3]
          %v1080 = vlaneseq
          %v1081 = vshrl.u32 %v1080, 7
          %v1082 = vsub.s32 0, %v1081
          %v1083 = vrot.slane %v1078, %v1082
          %v1084 = vlaneseq
          %v1085 = vshrl.u32 %v1084, 7
          %v1086 = vsub.s32 1, %v1085
          %v1087 = vrot.slane %v1078, %v1086
          %v1090 = vadd.f32 %v1062, %v1083
          %v1091 = vadd.f32 %v1063, %v1087
          %v1092 = vadd.f32 %v1064, %v1083
          %v1093 = vadd.f32 %v1065, %v1087
          %v1094 = vadd.f32 %v1066, %v1083
          %v1095 = vadd.f32 %v1067, %v1087
          %v1096 = vadd.f32 %v1068, %v1083
          %v1097 = vadd.f32 %v1069, %v1087
          %v1098 = vadd.f32 %v1070, %v1083
          %v1099 = vadd.f32 %v1071, %v1087
          %v1100 = vadd.f32 %v1072, %v1083
          %v1101 = vadd.f32 %v1073, %v1087
          %v1102 = vadd.f32 %v1074, %v1083
          %v1103 = vadd.f32 %v1075, %v1087
          %v1104 = vadd.f32 %v1076, %v1083
          %v1105 = vadd.f32 %v1077, %v1087
          %1106 = vst [vmem:[#allocation4] sm:$0xff] %v1090
          %1107 = vst [vmem:[#allocation4 + $0x8] sm:$0xff] %v1091
          %1108 = vst [vmem:[#allocation4 + $0x10] sm:$0xff] %v1092
          %1109 = vst [vmem:[#allocation4 + $0x18] sm:$0xff] %v1093
          %1110 = vst [vmem:[#allocation4 + $0x20] sm:$0xff] %v1094
          %1111 = vst [vmem:[#allocation4 + $0x28] sm:$0xff] %v1095
          %1112 = vst [vmem:[#allocation4 + $0x30] sm:$0xff] %v1096
          %1113 = vst [vmem:[#allocation4 + $0x38] sm:$0xff] %v1097
          %1114 = vst [vmem:[#allocation4 + $0x40] sm:$0xff] %v1098
          %1115 = vst [vmem:[#allocation4 + $0x48] sm:$0xff] %v1099
          %1116 = vst [vmem:[#allocation4 + $0x50] sm:$0xff] %v1100
          %1117 = vst [vmem:[#allocation4 + $0x58] sm:$0xff] %v1101
          %1118 = vst [vmem:[#allocation4 + $0x60] sm:$0xff] %v1102
          %1119 = vst [vmem:[#allocation4 + $0x68] sm:$0xff] %v1103
          %1120 = vst [vmem:[#allocation4 + $0x70] sm:$0xff] %v1104
          %1121 = vst [vmem:[#allocation4 + $0x78] sm:$0xff] %v1105
          %v1122 = vpack.c.bf16 %v1092, %v1090
          %v1123 = vpack.c.bf16 %v1093, %v1091
          %v1124 = vpack.c.bf16 %v1096, %v1094
          %v1125 = vpack.c.bf16 %v1097, %v1095
          %v1126 = vpack.c.bf16 %v1100, %v1098
          %v1127 = vpack.c.bf16 %v1101, %v1099
          %v1128 = vpack.c.bf16 %v1104, %v1102
          %v1129 = vpack.c.bf16 %v1105, %v1103
          %1130 = vst [vmem:[#allocation2] sm:$0xff] %v1122
          %1131 = vst [vmem:[#allocation2 + $0x8] sm:$0xff] %v1123
          %1132 = vst [vmem:[#allocation2 + $0x10] sm:$0xff] %v1124
          %1133 = vst [vmem:[#allocation2 + $0x18] sm:$0xff] %v1125
          %1134 = vst [vmem:[#allocation2 + $0x20] sm:$0xff] %v1126
          %1135 = vst [vmem:[#allocation2 + $0x28] sm:$0xff] %v1127
          %1136 = vst [vmem:[#allocation2 + $0x30] sm:$0xff] %v1128
          %1137 = vst [vmem:[#allocation2 + $0x38] sm:$0xff] %v1129
        $region93: #{class_block_forward.1} parent=84 // pred_fallthru
          _
        %v1138 = vld [vmem:[#allocation2] sm:$0xff]
        %v1139 = vld [vmem:[#allocation2 + $0x8] sm:$0xff]
        %v1140 = vld [vmem:[#allocation2 + $0x10] sm:$0xff]
        %v1141 = vld [vmem:[#allocation2 + $0x18] sm:$0xff]
        %v1142 = vld [vmem:[#allocation2 + $0x20] sm:$0xff]
        %v1143 = vld [vmem:[#allocation2 + $0x28] sm:$0xff]
        %v1144 = vld [vmem:[#allocation2 + $0x30] sm:$0xff]
        %v1145 = vld [vmem:[#allocation2 + $0x38] sm:$0xff]
        %v1146 = vld [vmem:[%s437] sm:$0xf]
        %v1147 = vld [vmem:[%s437 + $0x4] sm:$0xf]
        %v1148 = vld [vmem:[%s437 + $0x8] sm:$0xf]
        %v1149 = vld [vmem:[%s437 + $0xc] sm:$0xf]
        %v1150 = vld [vmem:[%s437 + $0x10] sm:$0xf]
        %v1151 = vld [vmem:[%s437 + $0x14] sm:$0xf]
        %v1152 = vld [vmem:[%s437 + $0x18] sm:$0xf]
        %v1153 = vld [vmem:[%s437 + $0x1c] sm:$0xf]
        %v1154 = vld [vmem:[%s437 + $0x20] sm:$0xf]
        %v1155 = vld [vmem:[%s437 + $0x24] sm:$0xf]
        %v1156 = vld [vmem:[%s437 + $0x28] sm:$0xf]
        %v1157 = vld [vmem:[%s437 + $0x2c] sm:$0xf]
        %v1158 = vld [vmem:[%s437 + $0x30] sm:$0xf]
        %v1159 = vld [vmem:[%s437 + $0x34] sm:$0xf]
        %v1160 = vld [vmem:[%s437 + $0x38] sm:$0xf]
        %v1161 = vld [vmem:[%s437 + $0x3c] sm:$0xf]
        %v1162 = vld [vmem:[%s437 + $0x40] sm:$0xf]
        %v1163 = vld [vmem:[%s437 + $0x44] sm:$0xf]
        %v1164 = vld [vmem:[%s437 + $0x48] sm:$0xf]
        %v1165 = vld [vmem:[%s437 + $0x4c] sm:$0xf]
        %v1166 = vld [vmem:[%s437 + $0x50] sm:$0xf]
        %v1167 = vld [vmem:[%s437 + $0x54] sm:$0xf]
        %v1168 = vld [vmem:[%s437 + $0x58] sm:$0xf]
        %v1169 = vld [vmem:[%s437 + $0x5c] sm:$0xf]
        %v1170 = vld [vmem:[%s437 + $0x60] sm:$0xf]
        %v1171 = vld [vmem:[%s437 + $0x64] sm:$0xf]
        %v1172 = vld [vmem:[%s437 + $0x68] sm:$0xf]
        %v1173 = vld [vmem:[%s437 + $0x6c] sm:$0xf]
        %v1174 = vld [vmem:[%s437 + $0x70] sm:$0xf]
        %v1175 = vld [vmem:[%s437 + $0x74] sm:$0xf]
        %v1176 = vld [vmem:[%s437 + $0x78] sm:$0xf]
        %v1177 = vld [vmem:[%s437 + $0x7c] sm:$0xf]
        %v1210 = vunpack.c.l.b16 %v1146
        %v1211 = vunpack.c.l.b16 %v1147
        %v1212 = vunpack.c.l.b16 %v1148
        %v1213 = vunpack.c.l.b16 %v1149
        %v1214 = vunpack.c.l.b16 %v1150
        %v1215 = vunpack.c.l.b16 %v1151
        %v1216 = vunpack.c.l.b16 %v1152
        %v1217 = vunpack.c.l.b16 %v1153
        %v1218 = vunpack.c.l.b16 %v1154
        %v1219 = vunpack.c.l.b16 %v1155
        %v1220 = vunpack.c.l.b16 %v1156
        %v1221 = vunpack.c.l.b16 %v1157
        %v1222 = vunpack.c.l.b16 %v1158
        %v1223 = vunpack.c.l.b16 %v1159
        %v1224 = vunpack.c.l.b16 %v1160
        %v1225 = vunpack.c.l.b16 %v1161
        %v1226 = vunpack.c.l.b16 %v1162
        %v1227 = vunpack.c.l.b16 %v1163
        %v1228 = vunpack.c.l.b16 %v1164
        %v1229 = vunpack.c.l.b16 %v1165
        %v1230 = vunpack.c.l.b16 %v1166
        %v1231 = vunpack.c.l.b16 %v1167
        %v1232 = vunpack.c.l.b16 %v1168
        %v1233 = vunpack.c.l.b16 %v1169
        %v1234 = vunpack.c.l.b16 %v1170
        %v1235 = vunpack.c.l.b16 %v1171
        %v1236 = vunpack.c.l.b16 %v1172
        %v1237 = vunpack.c.l.b16 %v1173
        %v1238 = vunpack.c.l.b16 %v1174
        %v1239 = vunpack.c.l.b16 %v1175
        %v1240 = vunpack.c.l.b16 %v1176
        %v1241 = vunpack.c.l.b16 %v1177
        %v1242 = vpack.c.b16 %v1211, %v1210
        %v1243 = vpack.c.b16 %v1213, %v1212
        %v1244 = vpack.c.b16 %v1215, %v1214
        %v1245 = vpack.c.b16 %v1217, %v1216
        %v1246 = vpack.c.b16 %v1219, %v1218
        %v1247 = vpack.c.b16 %v1221, %v1220
        %v1248 = vpack.c.b16 %v1223, %v1222
        %v1249 = vpack.c.b16 %v1225, %v1224
        %v1250 = vpack.c.b16 %v1227, %v1226
        %v1251 = vpack.c.b16 %v1229, %v1228
        %v1252 = vpack.c.b16 %v1231, %v1230
        %v1253 = vpack.c.b16 %v1233, %v1232
        %v1254 = vpack.c.b16 %v1235, %v1234
        %v1255 = vpack.c.b16 %v1237, %v1236
        %v1256 = vpack.c.b16 %v1239, %v1238
        %v1257 = vpack.c.b16 %v1241, %v1240
        %1274 = vmatprep.subr.bf16.mxu0 0
        %1275 = vmatpush1.bf16.msra.mxu0 %v1242
        %1276 = vmatprep.subr.bf16.mxu0 0
        %1277 = vmatpush1.bf16.msra.mxu0 %v1243
        %1278 = vmatprep.subr.bf16.mxu0 0
        %1279 = vmatpush1.bf16.msra.mxu0 %v1244
        %1280 = vmatprep.subr.bf16.mxu0 0
        %1281 = vmatpush1.bf16.msra.mxu0 %v1245
        %1282 = vmatprep.subr.bf16.mxu0 0
        %1283 = vmatpush1.bf16.msra.mxu0 %v1246
        %1284 = vmatprep.subr.bf16.mxu0 0
        %1285 = vmatpush1.bf16.msra.mxu0 %v1247
        %1286 = vmatprep.subr.bf16.mxu0 0
        %1287 = vmatpush1.bf16.msra.mxu0 %v1248
        %1288 = vmatprep.subr.bf16.mxu0 0
        %1289 = vmatpush1.bf16.msra.mxu0 %v1249
        %1290 = vmatprep.subr.bf16.mxu0 0
        %1291 = vmatpush1.bf16.msra.mxu0 %v1250
        %1292 = vmatprep.subr.bf16.mxu0 0
        %1293 = vmatpush1.bf16.msra.mxu0 %v1251
        %1294 = vmatprep.subr.bf16.mxu0 0
        %1295 = vmatpush1.bf16.msra.mxu0 %v1252
        %1296 = vmatprep.subr.bf16.mxu0 0
        %1297 = vmatpush1.bf16.msra.mxu0 %v1253
        %1298 = vmatprep.subr.bf16.mxu0 0
        %1299 = vmatpush1.bf16.msra.mxu0 %v1254
        %1300 = vmatprep.subr.bf16.mxu0 0
        %1301 = vmatpush1.bf16.msra.mxu0 %v1255
        %1302 = vmatprep.subr.bf16.mxu0 0
        %1303 = vmatpush1.bf16.msra.mxu0 %v1256
        %1304 = vmatprep.subr.bf16.mxu0 0
        %1305 = vmatpush1.bf16.msra.mxu0 %v1257
        %1306 = vmatprep.mubr.bf16.mxu0 %v1139
        %1307 = vmatmul.mubr.bf16.gmra.mrb[0].mxu0 %v1138
        %v1308 = vpop.f32.mrb[0].mxu0
        %v1309 = vadd.f32 0.0, %v1308
        %v1310 = vpop.f32.mrb[0].mxu0
        %v1311 = vpop.f32.mrb[0].mxu0
        %v1312 = vadd.f32 0.0, %v1311
        %v1313 = vpop.f32.mrb[0].mxu0
        %1314 = vmatprep.mubr.bf16.mxu0 %v1141
        %1315 = vmatmul.mubr.bf16.gmra.mrb[0].mxu0 %v1140
        %v1316 = vpop.f32.mrb[0].mxu0
        %v1317 = vadd.f32 0.0, %v1316
        %v1318 = vpop.f32.mrb[0].mxu0
        %v1319 = vpop.f32.mrb[0].mxu0
        %v1320 = vadd.f32 0.0, %v1319
        %v1321 = vpop.f32.mrb[0].mxu0
        %1322 = vmatprep.mubr.bf16.mxu0 %v1143
        %1323 = vmatmul.mubr.bf16.gmra.mrb[0].mxu0 %v1142
        %v1324 = vpop.f32.mrb[0].mxu0
        %v1325 = vadd.f32 0.0, %v1324
        %v1326 = vpop.f32.mrb[0].mxu0
        %v1327 = vpop.f32.mrb[0].mxu0
        %v1328 = vadd.f32 0.0, %v1327
        %v1329 = vpop.f32.mrb[0].mxu0
        %1330 = vmatprep.mubr.bf16.mxu0 %v1145
        %1331 = vmatmul.mubr.bf16.gmra.mrb[0].mxu0 %v1144
        %v1332 = vpop.f32.mrb[0].mxu0
        %v1333 = vadd.f32 0.0, %v1332
        %v1334 = vpop.f32.mrb[0].mxu0
        %v1335 = vpop.f32.mrb[0].mxu0
        %v1336 = vadd.f32 0.0, %v1335
        %v1337 = vpop.f32.mrb[0].mxu0
        %1338 = vdwg.mxu0
        %1339 = vst [vmem:[%s467] sm:$0xff] %v1309
        %1340 = vst [vmem:[%s467 + $0x8] sm:$0xff] %v1312
        %1341 = vst [vmem:[%s467 + $0x10] sm:$0xff] %v1317
        %1342 = vst [vmem:[%s467 + $0x18] sm:$0xff] %v1320
        %1343 = vst [vmem:[%s467 + $0x20] sm:$0xff] %v1325
        %1344 = vst [vmem:[%s467 + $0x28] sm:$0xff] %v1328
        %1345 = vst [vmem:[%s467 + $0x30] sm:$0xff] %v1333
        %1346 = vst [vmem:[%s467 + $0x38] sm:$0xff] %v1336
        %s1347 = sand.u32 %s205, 1
        %s1348 = scalar_lea.sflag [#allocation7], %s1347
        %s1349 = sand.u32 %s205, 1
        %s1350 = smul.addr %s1349, 64
        %s1351 = scalar_lea.vmem [#allocation6], %s1350
        // Predicated region
        $region94: #{class_block_forward.1} parent=84 // pred_check
          %p1352 = pneg %p189
        $region95: #{class_block_forward.1} parent=84 // pred_check_branch
          %1354 = sbr.rel (%p1352) target = $region97
        $region96: #{class_block_forward.1} parent=84 // pred_region
          %s1356 = ssub.s32 2048, 2048
          %1357 = vsyncadd [#allocation5], %s1356
          %s1358 = sshll.u32 [#allocation4], 4
          %s1359 = int_to_ptr.vmem [resolvable:$true] %s1358
          %1364 = dma.vmem_to_hbm [thread:$0]  %s1359, 2048, %s7, [#allocation5], 256, 256, 16
        $region97: #{class_block_forward.1} parent=84 // pred_fallthru
          _
        // Predicated region
        $region98: #{class_block_forward.1} parent=84 // pred_check
          %p1365 = pneg %p215
        $region99: #{class_block_forward.1} parent=84 // pred_check_branch
          %1367 = sbr.rel (%p1365) target = $region101
        $region100: #{class_block_forward.1} parent=84 // pred_region
          %s1369 = ssub.s32 1024, 1024
          %1370 = vsyncadd %s1348, %s1369
          %s1371 = smul.addr %s24, 128
          %s1372 = scalar_lea.hbm %s8, %s1371
          %s1373 = sshll.u32 %s1351, 4
          %s1374 = int_to_ptr.vmem [resolvable:$true] %s1373
          %1379 = dma.vmem_to_hbm [thread:$0]  %s1374, 1024, %s1372, %s1348, 128, 384, 8
        $region101: #{class_block_forward.1} parent=84 // pred_fallthru
          _
        // Predicated region
        $region102: #{class_block_forward.1} parent=84 // pred_check
          %p1380 = pneg %p189
        $region103: #{class_block_forward.1} parent=84 // pred_check_branch
          %1382 = sbr.rel (%p1380) target = $region105
        $region104: #{class_block_forward.1} parent=84 // pred_region
          %1383 = dma.done [#allocation5], 2048
        $region105: #{class_block_forward.1} parent=84 // pred_fallthru
          _
      $region85: #{class_block_forward.1} parent=5 // pred_fallthru
        _
      %p1384 = scmp.le.s32.totalorder 2, %s19
      // Predicated region
      $region106: #{class_block_forward.1} parent=5 // pred_check
        %p1385 = pneg %p1384
      $region107: #{class_block_forward.1} parent=5 // pred_check_branch
        %1387 = sbr.rel (%p1385) target = $region109
      $region108: #{class_block_forward.1} parent=5 // pred_region
        %s1388 = ssub.s32 %s19, 2
        // Predicated region
        $region110: #{class_block_forward.1} parent=108 // pred_check
          %p1389 = pneg %p221
        $region111: #{class_block_forward.1} parent=108 // pred_check_branch
          %1391 = sbr.rel (%p1389) target = $region113
        $region112: #{class_block_forward.1} parent=108 // pred_region
          %s1392 = sand.u32 %s206, 1
          %s1393 = scalar_lea.sflag [#allocation7], %s1392
          %s1394 = sand.u32 %s206, 1
          %s1395 = smul.addr %s1394, 64
          %s1396 = scalar_lea.vmem [#allocation6], %s1395
          %1397 = dma.done %s1393, 1024
        $region113: #{class_block_forward.1} parent=108 // pred_fallthru
          _
      $region109: #{class_block_forward.1} parent=5 // pred_fallthru
        _
    $region6: #{class_block_forward.1} parent=1 // loop_footer
      %s23 = sadd.s32 1, %s19
    $region7: #{class_block_forward.1} parent=1 // loop_footer_branch
      %18 = sbr.rel target = $region3
    $region8: #{class_block_forward.1} parent=1 // loop_exit
      _
    %1398 = vsyncpa [#allocation5], 1
    %s1399 = scalar_lea.sflag [#allocation5], 1
    %1400 = vsyncpa %s1399, 1
    %1401 = vsyncpa [#allocation7], 1
    %s1402 = scalar_lea.sflag [#allocation7], 1
    %1403 = vsyncpa %s1402, 1

</llo_original>
